<compile_context>
chip_gen: v7x
topology: tpu7x:2x2x1
jax: 0.10.0
libtpu: 0.0.40
codegen_flags: <defaults>
</compile_context>

<pallas_src>
import functools

import jax
import jax.numpy as jnp
import numpy as np
from jax.experimental import pallas as pl
from jax.experimental.pallas import tpu as pltpu


def _bow_kernel(f_ref, embt_ref, nbias_ref, codes_ref, bow_ref, *,
                images_per_block, locs_per_image):
    """One grid step over `images_per_block` images (L = locs_per_image each).

    f_ref:     (bb*L, C)  cropped features, channels-last, spatially flattened
    embt_ref:  (C, K)     visual-word embeddings^T, pre-scaled by 2*scale
    nbias_ref: (1, K)     -scale * ||e_k||^2
    codes_ref: (bb*L, K)  soft-assignment codes (K on lanes -> lane-dense stores)
    bow_ref:   (bb, K)    L1-normalized, spatially max-pooled BoW vectors (f32)
    """
    bb, L = images_per_block, locs_per_image

    f = f_ref[...]                                                      # (bb*L, C)
    # Single tall MXU matmul for the whole block; scale already folded into RHS.
    logits = jnp.dot(f, embt_ref[...],
                     preferred_element_type=jnp.float32) + nbias_ref[...]  # (bb*L, K)

    # Softmax over visual words (lane axis).
    m = jnp.max(logits, axis=-1, keepdims=True)                         # (bb*L, 1)
    e = jnp.exp(logits - m)                                             # EUP
    denom = jnp.sum(e, axis=-1, keepdims=True)                          # (bb*L, 1)
    inv = pl.reciprocal(denom, approx=True)                             # EUP
    inv = inv * (2.0 - denom * inv)                                     # Newton refine
    codes = e * inv                                                     # (bb*L, K) f32

    # Spatial max-pool per image + L1-normalize, in f32 *before* the (possibly
    # bf16) codes store so bow keeps full precision.
    per_img = codes.reshape(bb, L, codes.shape[-1])                     # (bb, L, K)
    bow = jnp.max(per_img, axis=1)                                      # (bb, K)
    s = jnp.maximum(jnp.sum(bow, axis=-1, keepdims=True), 1e-12)        # (bb, 1)
    s_inv = pl.reciprocal(s, approx=True)
    s_inv = s_inv * (2.0 - s * s_inv)
    bow_ref[...] = (bow * s_inv).astype(bow_ref.dtype)

    codes_ref[...] = codes.astype(codes_ref.dtype)                      # bf16 by default


def _choose_images_per_block(batch, locs, min_rows=512, max_rows=2048):
    """Pick images/block: multiple of 8 (keeps (8,128) alignment), ~512-2048
    rows per block, as many grid steps as possible (pipelining + v7x megacore)."""
    divs = [d for d in range(8, batch, 8) if batch % d == 0]
    good = [d for d in divs if min_rows <= d * locs <= max_rows]
    if good:
        return min(good)                 # deepest pipeline with a roofline-sized block
    under = [d for d in divs if d * locs <= max_rows]
    if under:
        return max(under)
    if divs:
        return min(divs)
    return batch                         # tiny batch: one full-batch block


def _vmem_limit_bytes(rows, C, K, bb, codes_itemsize):
    """Explicit per-step VMEM budget (double-buffered blocks + f32 intermediates),
    with headroom, capped under v7x's 64 MiB physical VMEM per TensorCore."""
    f32 = 4
    per_step = (2 * rows * C * f32                 # features in  (double-buffered)
                + 2 * rows * K * codes_itemsize    # codes out    (double-buffered)
                + 2 * bb * K * f32                 # bow out      (double-buffered)
                + 2 * (C * K + K) * f32            # embt + nbias (double-buffered)
                + 4 * rows * K * f32)              # logits / exp / codes / pooled copies
    per_step += 4 * 1024 * 1024                    # Mosaic internal scratch headroom
    return int(min(max(per_step, 16 * 1024 * 1024), 64 * 1024 * 1024))


def bow_extractor_forward(features, embedding, inv_delta=15.0,
                          min_distance_mean=0.5, *,
                          features_channels_last=False,
                          codes_channels_last=True,
                          codes_dtype=jnp.bfloat16,
                          images_per_block=None):
    """BoWExtractor.forward (eval mode, soft assignment, max pooling).

    features:  (B, C, H, W) f32, or (B, H, W, C) if features_channels_last=True
               (channels-last input skips the NCHW->NHWC wrapper transpose).
    embedding: (K, C) f32 visual-word dictionary.

    Returns (bow (B, K) f32, codes). codes is (B, H-2, W-2, K) in `codes_dtype`
    by default (performance contract); pass codes_channels_last=False and
    codes_dtype=jnp.float32 for the exact PyTorch (B, K, H-2, W-2) f32 layout
    (costs an extra full-HBM transpose of the largest tensor).
    """
    if features_channels_last:
        B, H, W, C = features.shape
        f = features[:, 1:-1, 1:-1, :]
    else:
        B, C, H, W = features.shape
        f = jnp.transpose(features[:, :, 1:-1, 1:-1], (0, 2, 3, 1))
    Hc, Wc = H - 2, W - 2
    L = Hc * Wc
    K = embedding.shape[0]

    f = f.reshape(B * L, C).astype(jnp.float32)

    if images_per_block is None:
        images_per_block = _choose_images_per_block(B, L)
    bb = images_per_block
    assert B % bb == 0, "images_per_block must divide the batch"
    assert bb == B or bb % 8 == 0, (
        "images_per_block must be a multiple of 8 (or the full batch) to keep "
        "the (bb, K) bow block and (bb*L, .) blocks (8,128)-aligned")
    num_blocks = B // bb
    rows = bb * L

    scale = float(inv_delta) / float(min_distance_mean)
    emb = embedding.astype(jnp.float32)
    # NOTE: keep these operands f32 (scale folded in -> logits O(1e3); bf16 here
    # would inject O(1-10) absolute logit error and corrupt the softmax).
    embt_scaled = jnp.transpose(emb, (1, 0)) * (2.0 * scale)            # (C, K)
    nbias = (-scale) * jnp.sum(emb * emb, axis=1)[None, :]              # (1, K)

    kernel = functools.partial(_bow_kernel,
                               images_per_block=bb, locs_per_image=L)

    codes2d, bow = pl.pallas_call(
        kernel,
        out_shape=(jax.ShapeDtypeStruct((B * L, K), codes_dtype),
                   jax.ShapeDtypeStruct((B, K), jnp.float32)),
        grid_spec=pltpu.PrefetchScalarGridSpec(
            num_scalar_prefetch=0,
            grid=(num_blocks,),
            in_specs=[
                pl.BlockSpec((rows, C), lambda i: (i, 0)),              # features
                pl.BlockSpec((C, K), lambda i: (0, 0)),                 # 2*scale*E^T
                pl.BlockSpec((1, K), lambda i: (0, 0)),                 # -scale*||e||^2
            ],
            out_specs=[
                pl.BlockSpec((rows, K), lambda i: (i, 0)),              # codes
                pl.BlockSpec((bb, K), lambda i: (i, 0)),                # bow
            ],
        ),
        compiler_params=pltpu.CompilerParams(
            dimension_semantics=("parallel",),
            vmem_limit_bytes=_vmem_limit_bytes(
                rows, C, K, bb, jnp.dtype(codes_dtype).itemsize),
        ),
    )(f, embt_scaled, nbias)

    codes_nhwc = codes2d.reshape(B, Hc, Wc, K)
    if codes_channels_last:
        return bow, codes_nhwc
    # PyTorch convention (B, K, H', W'): full HBM round-trip of the largest
    # tensor; prefer the default channels-last contract downstream.
    return bow, jnp.transpose(codes_nhwc, (0, 3, 1, 2))


def _reference(features_nchw, embedding, inv_delta=15.0, min_distance_mean=0.5):
    """Plain-JAX reference mirroring the PyTorch forward (NCHW in/out)."""
    f = features_nchw[:, :, 1:-1, 1:-1].astype(jnp.float32)
    emb = embedding.astype(jnp.float32)
    emb_sq = jnp.sum(emb * emb, axis=1)
    cross = jnp.einsum('bchw,kc->bkhw', f, emb)
    f_sq = jnp.sum(f * f, axis=1, keepdims=True)
    dist = f_sq - 2.0 * cross + emb_sq[None, :, None, None]
    scale = inv_delta / min_distance_mean
    codes = jax.nn.softmax(-scale * dist, axis=1)
    bow = jnp.max(codes, axis=(2, 3))
    bow = bow / jnp.sum(jnp.abs(bow), axis=1, keepdims=True)
    return bow, codes


if __name__ == "__main__":
    num_words = 128      # K
    num_channels = 32    # C
    H = W = 10           # cropped spatial = 8x8 -> L = 64

    key = jax.random.PRNGKey(0)
    k_feat, k_emb = jax.random.split(key)
    # torch.randn(num_words, num_channels).clamp(min=0)
    embedding = jnp.maximum(
        jax.random.normal(k_emb, (num_words, num_channels), dtype=jnp.float32), 0.0)

    # ---- Config 1: default perf contract (multi-block pipelined grid,
    #      channels-last bf16 codes). B=16 -> bb=8, 2 "parallel" grid steps. ----
    B1 = 16
    feats1 = jax.random.normal(k_feat, (B1, num_channels, H, W), dtype=jnp.float32)
    bow1, codes1 = bow_extractor_forward(feats1, embedding)
    bow1, codes1 = jax.block_until_ready((bow1, codes1))

    bow1_ref, codes1_ref = _reference(feats1, embedding)
    assert bow1.shape == (B1, num_words)
    assert codes1.shape == (B1, H - 2, W - 2, num_words)
    np.testing.assert_allclose(np.asarray(bow1), np.asarray(bow1_ref),
                               atol=3e-4, rtol=1e-3)
    # codes are bf16 on this path -> looser tolerance (values in [0, 1]).
    np.testing.assert_allclose(
        np.asarray(codes1, dtype=np.float32),
        np.asarray(jnp.transpose(codes1_ref, (0, 2, 3, 1))),
        atol=8e-3, rtol=2e-2)

    # ---- Config 2: PyTorch-layout compatibility path (f32 NCHW codes,
    #      tiny batch -> single full-batch block). ----
    B2 = 2
    feats2 = jax.random.normal(jax.random.PRNGKey(1),
                               (B2, num_channels, H, W), dtype=jnp.float32)
    bow2, codes2 = bow_extractor_forward(feats2, embedding,
                                         codes_channels_last=False,
                                         codes_dtype=jnp.float32)
    bow2, codes2 = jax.block_until_ready((bow2, codes2))

    bow2_ref, codes2_ref = _reference(feats2, embedding)
    assert bow2.shape == (B2, num_words)
    assert codes2.shape == (B2, num_words, H - 2, W - 2)
    # Tolerance accounts for f32 rounding with large (|logit| ~ 1e3) softmax
    # arguments and the algebraically-equivalent (shift-invariant) logit form.
    np.testing.assert_allclose(np.asarray(bow2), np.asarray(bow2_ref),
                               atol=3e-4, rtol=1e-3)
    np.testing.assert_allclose(np.asarray(codes2), np.asarray(codes2_ref),
                               atol=3e-4, rtol=1e-3)

    print("KERNEL_OK")
</pallas_src>

<mosaic_0001>
module attributes {stable_mosaic.version = 11 : i64} {
  func.func @_bow_kernel(%arg0: i32, %arg1: memref<512x32xf32, #tpu.memory_space<vmem>>, %arg2: memref<32x128xf32, #tpu.memory_space<vmem>>, %arg3: memref<1x128xf32, #tpu.memory_space<vmem>>, %arg4: memref<512x128xbf16, #tpu.memory_space<vmem>>, %arg5: memref<8x128xf32, #tpu.memory_space<vmem>>) attributes {dimension_semantics = [#tpu.dimension_semantics<parallel>], iteration_bounds = array<i64: 2>, scalar_prefetch = 0 : i64, scratch_operands = 0 : i64, tpu.core_type = #tpu.core_type<tc>, window_params = [{transform_indices = @transform_0, window_bounds = array<i64: 512, 32>}, {pipeline_mode = #tpu.pipeline_mode<synchronous>, transform_indices = @transform_1, window_bounds = array<i64: 32, 128>}, {pipeline_mode = #tpu.pipeline_mode<synchronous>, transform_indices = @transform_2, window_bounds = array<i64: 1, 128>}, {transform_indices = @transform_3, window_bounds = array<i64: 512, 128>}, {transform_indices = @transform_4, window_bounds = array<i64: 8, 128>}]} {
    %c0 = arith.constant 0 : index
    %c0_0 = arith.constant 0 : index
    %0 = vector.load %arg1[%c0, %c0_0] : memref<512x32xf32, #tpu.memory_space<vmem>>, vector<512x32xf32>
    %c0_1 = arith.constant 0 : index
    %c0_2 = arith.constant 0 : index
    %1 = vector.load %arg2[%c0_1, %c0_2] : memref<32x128xf32, #tpu.memory_space<vmem>>, vector<32x128xf32>
    %cst = arith.constant dense<0.000000e+00> : vector<512x128xf32>
    %2 = tpu.matmul %0, %1, %cst {dimension_numbers = #tpu.dot_dimension_numbers<[1], [0], [0], [1], [0, 0, 1, 1], [], []>} : vector<512x32xf32>, vector<32x128xf32>, vector<512x128xf32> -> vector<512x128xf32>
    %c0_3 = arith.constant 0 : index
    %c0_4 = arith.constant 0 : index
    %3 = vector.load %arg3[%c0_3, %c0_4] : memref<1x128xf32, #tpu.memory_space<vmem>>, vector<1x128xf32>
    %4 = vector.broadcast %3 : vector<1x128xf32> to vector<512x128xf32>
    %5 = arith.addf %2, %4 : vector<512x128xf32>
    %cst_5 = arith.constant dense<0xFF800000> : vector<512xf32>
    %6 = vector.multi_reduction <maximumf>, %5, %cst_5 [1] : vector<512x128xf32> to vector<512xf32>
    %7 = vector.shape_cast %6 : vector<512xf32> to vector<512x1xf32>
    %8 = vector.broadcast %7 : vector<512x1xf32> to vector<512x128xf32>
    %9 = arith.subf %5, %8 : vector<512x128xf32>
    %10 = math.exp %9 : vector<512x128xf32>
    %cst_6 = arith.constant dense<0.000000e+00> : vector<512xf32>
    %11 = vector.multi_reduction <add>, %10, %cst_6 [1] : vector<512x128xf32> to vector<512xf32>
    %12 = vector.shape_cast %11 : vector<512xf32> to vector<512x1xf32>
    %13 = tpu.reciprocal %12 {approx = true} : vector<512x1xf32> -> vector<512x1xf32>
    %14 = arith.mulf %12, %13 : vector<512x1xf32>
    %cst_7 = arith.constant 2.000000e+00 : f32
    %15 = vector.broadcast %cst_7 : f32 to vector<512x1xf32>
    %16 = arith.subf %15, %14 : vector<512x1xf32>
    %17 = arith.mulf %13, %16 : vector<512x1xf32>
    %18 = vector.broadcast %17 : vector<512x1xf32> to vector<512x128xf32>
    %19 = arith.mulf %10, %18 : vector<512x128xf32>
    %20 = vector.shape_cast %19 : vector<512x128xf32> to vector<8x64x128xf32>
    %cst_8 = arith.constant dense<0xFF800000> : vector<8x128xf32>
    %21 = vector.multi_reduction <maximumf>, %20, %cst_8 [1] : vector<8x64x128xf32> to vector<8x128xf32>
    %cst_9 = arith.constant dense<0.000000e+00> : vector<8xf32>
    %22 = vector.multi_reduction <add>, %21, %cst_9 [1] : vector<8x128xf32> to vector<8xf32>
    %23 = vector.shape_cast %22 : vector<8xf32> to vector<8x1xf32>
    %cst_10 = arith.constant 9.99999996E-13 : f32
    %24 = vector.broadcast %cst_10 : f32 to vector<8x1xf32>
    %25 = arith.maximumf %23, %24 : vector<8x1xf32>
    %26 = tpu.reciprocal %25 {approx = true} : vector<8x1xf32> -> vector<8x1xf32>
    %27 = arith.mulf %25, %26 : vector<8x1xf32>
    %cst_11 = arith.constant 2.000000e+00 : f32
    %28 = vector.broadcast %cst_11 : f32 to vector<8x1xf32>
    %29 = arith.subf %28, %27 : vector<8x1xf32>
    %30 = arith.mulf %26, %29 : vector<8x1xf32>
    %31 = vector.broadcast %30 : vector<8x1xf32> to vector<8x128xf32>
    %32 = arith.mulf %21, %31 : vector<8x128xf32>
    %c0_12 = arith.constant 0 : index
    %c0_13 = arith.constant 0 : index
    %33 = vector.load %arg5[%c0_12, %c0_13] : memref<8x128xf32, #tpu.memory_space<vmem>>, vector<8x128xf32>
    tpu.vector_store %arg5[%c0_12, %c0_13], %32 {strides = array<i32>} : memref<8x128xf32, #tpu.memory_space<vmem>>, vector<8x128xf32>,
    %34 = arith.truncf %19 : vector<512x128xf32> to vector<512x128xbf16>
    %c0_14 = arith.constant 0 : index
    %c0_15 = arith.constant 0 : index
    %35 = vector.load %arg4[%c0_14, %c0_15] : memref<512x128xbf16, #tpu.memory_space<vmem>>, vector<512x128xbf16>
    tpu.vector_store %arg4[%c0_14, %c0_15], %34 {strides = array<i32>} : memref<512x128xbf16, #tpu.memory_space<vmem>>, vector<512x128xbf16>,
    return
  }
  func.func @transform_0(%arg0: i32) -> (i32, i32) {
    %c0_i32 = arith.constant 0 : i32
    %c0_i32_0 = arith.constant 0 : i32
    return %arg0, %c0_i32 : i32, i32
  }
  func.func @transform_1(%arg0: i32) -> (i32, i32) {
    %c0_i32 = arith.constant 0 : i32
    %c0_i32_0 = arith.constant 0 : i32
    %c0_i32_1 = arith.constant 0 : i32
    return %c0_i32, %c0_i32_0 : i32, i32
  }
  func.func @transform_2(%arg0: i32) -> (i32, i32) {
    %c0_i32 = arith.constant 0 : i32
    %c0_i32_0 = arith.constant 0 : i32
    %c0_i32_1 = arith.constant 0 : i32
    return %c0_i32, %c0_i32_0 : i32, i32
  }
  func.func @transform_3(%arg0: i32) -> (i32, i32) {
    %c0_i32 = arith.constant 0 : i32
    %c0_i32_0 = arith.constant 0 : i32
    return %arg0, %c0_i32 : i32, i32
  }
  func.func @transform_4(%arg0: i32) -> (i32, i32) {
    %c0_i32 = arith.constant 0 : i32
    %c0_i32_0 = arith.constant 0 : i32
    return %arg0, %c0_i32 : i32, i32
  }
}

</mosaic_0001>

<llo_original>
// kernel: tpu_custom_call.1
$region0: #{tpu_custom_call.1}
  #allocation0 [shape = 'u32[]', space=smem, size = 0x4, offset = 0x4, fixed_abs, tag = 'smem constant byte address 0x4 - core index']
  #allocation1 [shape = 'u32[144,128]{1,0:T(1,128)}', space=vmem, size = 0x12000, scoped, tag = 'internal scratch']
  %s0 = inlined_call_operand.vmem [shape: f32[1024,32], index: 0, kind: input, shape index: {}]
  %s1 = inlined_call_operand.vmem [shape: f32[32,128], index: 1, kind: input, shape index: {}]
  %s2 = inlined_call_operand.vmem [shape: f32[1,128], index: 2, kind: input, shape index: {}]
  %s3 = inlined_call_operand.hbm [shape: bf16[1024,128], index: 3, kind: output, shape index: {0}]
  %s4 = inlined_call_operand.hbm [shape: f32[16,128], index: 4, kind: output, shape index: {1}]
  %5 = xla_tuple %s3, %s4
  %s6 = sld [smem:[#allocation0]]
  $region53: #{tpu_custom_call.1} parent=0
    _
  %s8 = ssub.s32 1, %s6
  %s9 = scalar_select 0, %s8, %s6
  $region1: #{tpu_custom_call.1} parent=0
    #allocation2 [shape = 'u8[262144]{0}', space=vmem, size = 0x40000, scoped, tag = 'output window, operand 0']
    #allocation3 [shape = 's32[2]{0}', space=sflag, size = 0x8, scoped, tag = 'scoped memory for tpu_custom_call.1']
    #allocation4 [shape = 'u8[8192]{0}', space=vmem, size = 0x2000, scoped, tag = 'output window, operand 1']
    #allocation5 [shape = 's32[2]{0}', space=sflag, size = 0x8, scoped, tag = 'scoped memory for tpu_custom_call.1']
    %10 = vsyncpa [#allocation3], 0
    %s11 = scalar_lea.sflag [#allocation3], 1
    %12 = vsyncpa %s11, 0
    %13 = vsyncpa [#allocation5], 0
    %s14 = scalar_lea.sflag [#allocation5], 1
    %15 = vsyncpa %s14, 0
    loop: start=0, step=1, limit=4
    $region2: #{tpu_custom_call.1} parent=1 // loop_pre_header
      _
    $region3: #{tpu_custom_call.1} parent=1 // loop_header
      %s17 = sphi 0, %s21
      %p18 = scmp.ge.s32.totalorder %s17, 4
      %s27 = sphi 0, %s29
      %s30 = sphi 0, %s27
      %s31 = sphi 0, %s30
      %s47 = sphi 0, %s31
      %s51 = sphi 0, %s51
      %s53 = sphi 0, %s51
      %s54 = sphi 0, %s53
      %s68 = sphi 0, %s54
      %s72 = sphi 0, %s72
      %s74 = sphi 0, %s72
      %s75 = sphi 0, %s74
      %s89 = sphi 0, %s75
      %s95 = sphi 0, %s97
      %s98 = sphi 0, %s95
      %s99 = sphi 0, %s98
      %s115 = sphi 0, %s99
      %s121 = sphi 0, %s123
      %s124 = sphi 0, %s121
      %s125 = sphi 0, %s124
      %s141 = sphi 0, %s125
    $region4: #{tpu_custom_call.1} parent=1 // loop_header_branch
      %20 = sbr.rel (%p18) target = $region8
    $region5: #{tpu_custom_call.1} parent=1 // loop_body
      %s22 = ssub.s32 %s17, 1
      %s23 = ssub.s32 %s17, 2
      %s24 = sadd.s32 %s17, 1
      %s25 = ssub.s32 %s17, %s24
      %p26 = scmp.eq.s32.totalorder %s25, 0
      %s28 = sadd.s32 %s27, 1
      %s29 = scalar_select %p26, %s27, %s28
      %p32 = pneg %p26
      %p33 = scmp.eq.s32.totalorder %s17, 1
      %p34 = por %p32, %p33
      %p35 = scmp.ne.s32.totalorder %s27, %s30
      %p36 = scmp.eq.s32.totalorder %s17, 0
      %p37 = por %p35, %p36
      %p38 = scmp.ne.s32.totalorder %s27, %s30
      %p39 = scmp.eq.s32.totalorder %s22, 1
      %p40 = por %p38, %p39
      %p41 = scmp.ne.s32.totalorder %s30, %s31
      %p42 = scmp.eq.s32.totalorder %s22, 0
      %p43 = por %p41, %p42
      %p44 = scmp.ne.s32.totalorder %s30, %s31
      %p45 = scmp.eq.s32.totalorder %s23, 1
      %p46 = por %p44, %p45
      %p48 = scmp.ne.s32.totalorder %s31, %s47
      %p49 = scmp.eq.s32.totalorder %s23, 0
      %p50 = por %p48, %p49
      %s52 = sadd.s32 %s51, 1
      %p55 = scmp.eq.s32.totalorder %s17, 1
      %p56 = scmp.ne.s32.totalorder %s51, %s53
      %p57 = scmp.eq.s32.totalorder %s17, 0
      %p58 = por %p56, %p57
      %p59 = scmp.ne.s32.totalorder %s51, %s53
      %p60 = scmp.eq.s32.totalorder %s22, 1
      %p61 = por %p59, %p60
      %p62 = scmp.ne.s32.totalorder %s53, %s54
      %p63 = scmp.eq.s32.totalorder %s22, 0
      %p64 = por %p62, %p63
      %p65 = scmp.ne.s32.totalorder %s53, %s54
      %p66 = scmp.eq.s32.totalorder %s23, 1
      %p67 = por %p65, %p66
      %p69 = scmp.ne.s32.totalorder %s54, %s68
      %p70 = scmp.eq.s32.totalorder %s23, 0
      %p71 = por %p69, %p70
      %s73 = sadd.s32 %s72, 1
      %p76 = scmp.eq.s32.totalorder %s17, 1
      %p77 = scmp.ne.s32.totalorder %s72, %s74
      %p78 = scmp.eq.s32.totalorder %s17, 0
      %p79 = por %p77, %p78
      %p80 = scmp.ne.s32.totalorder %s72, %s74
      %p81 = scmp.eq.s32.totalorder %s22, 1
      %p82 = por %p80, %p81
      %p83 = scmp.ne.s32.totalorder %s74, %s75
      %p84 = scmp.eq.s32.totalorder %s22, 0
      %p85 = por %p83, %p84
      %p86 = scmp.ne.s32.totalorder %s74, %s75
      %p87 = scmp.eq.s32.totalorder %s23, 1
      %p88 = por %p86, %p87
      %p90 = scmp.ne.s32.totalorder %s75, %s89
      %p91 = scmp.eq.s32.totalorder %s23, 0
      %p92 = por %p90, %p91
      %s93 = ssub.s32 %s17, %s24
      %p94 = scmp.eq.s32.totalorder %s93, 0
      %s96 = sadd.s32 %s95, 1
      %s97 = scalar_select %p94, %s95, %s96
      %p100 = pneg %p94
      %p101 = scmp.eq.s32.totalorder %s17, 1
      %p102 = por %p100, %p101
      %p103 = scmp.ne.s32.totalorder %s95, %s98
      %p104 = scmp.eq.s32.totalorder %s17, 0
      %p105 = por %p103, %p104
      %p106 = scmp.ne.s32.totalorder %s95, %s98
      %p107 = scmp.eq.s32.totalorder %s22, 1
      %p108 = por %p106, %p107
      %p109 = scmp.ne.s32.totalorder %s98, %s99
      %p110 = scmp.eq.s32.totalorder %s22, 0
      %p111 = por %p109, %p110
      %p112 = scmp.ne.s32.totalorder %s98, %s99
      %p113 = scmp.eq.s32.totalorder %s23, 1
      %p114 = por %p112, %p113
      %p116 = scmp.ne.s32.totalorder %s99, %s115
      %p117 = scmp.eq.s32.totalorder %s23, 0
      %p118 = por %p116, %p117
      %s119 = ssub.s32 %s17, %s24
      %p120 = scmp.eq.s32.totalorder %s119, 0
      %s122 = sadd.s32 %s121, 1
      %s123 = scalar_select %p120, %s121, %s122
      %p126 = pneg %p120
      %p127 = scmp.eq.s32.totalorder %s17, 1
      %p128 = por %p126, %p127
      %p129 = scmp.ne.s32.totalorder %s121, %s124
      %p130 = scmp.eq.s32.totalorder %s17, 0
      %p131 = por %p129, %p130
      %p132 = scmp.ne.s32.totalorder %s121, %s124
      %p133 = scmp.eq.s32.totalorder %s22, 1
      %p134 = por %p132, %p133
      %p135 = scmp.ne.s32.totalorder %s124, %s125
      %p136 = scmp.eq.s32.totalorder %s22, 0
      %p137 = por %p135, %p136
      %p138 = scmp.ne.s32.totalorder %s124, %s125
      %p139 = scmp.eq.s32.totalorder %s23, 1
      %p140 = por %p138, %p139
      %p142 = scmp.ne.s32.totalorder %s125, %s141
      %p143 = scmp.eq.s32.totalorder %s23, 0
      %p144 = por %p142, %p143
      %p145 = scmp.le.s32.totalorder 1, %s17
      %p146 = scmp.lt.s32.totalorder %s17, 3
      %p147 = pnand %p145, %p146
      %p148 = pneg %p147
      // Predicated region
      $region9: #{tpu_custom_call.1} parent=5 // pred_check
        _
      $region10: #{tpu_custom_call.1} parent=5 // pred_check_branch
        %150 = sbr.rel (%p147) target = $region12
      $region11: #{tpu_custom_call.1} parent=5 // pred_region
        %s151 = ssub.s32 %s17, 1
        // Predicated region
        $region13: #{tpu_custom_call.1} parent=11 // pred_check
          %p152 = pneg %p64
        $region14: #{tpu_custom_call.1} parent=11 // pred_check_branch
          %154 = sbr.rel (%p152) target = $region16
        $region15: #{tpu_custom_call.1} parent=11 // pred_region
          _
        $region16: #{tpu_custom_call.1} parent=11 // pred_fallthru
          _
        // Predicated region
        $region17: #{tpu_custom_call.1} parent=11 // pred_check
          %p155 = pneg %p85
        $region18: #{tpu_custom_call.1} parent=11 // pred_check_branch
          %157 = sbr.rel (%p155) target = $region20
        $region19: #{tpu_custom_call.1} parent=11 // pred_region
          _
        $region20: #{tpu_custom_call.1} parent=11 // pred_fallthru
          _
      $region12: #{tpu_custom_call.1} parent=5 // pred_fallthru
        _
      %p158 = scmp.lt.s32.totalorder %s17, 2
      // Predicated region
      $region21: #{tpu_custom_call.1} parent=5 // pred_check
        %p159 = pneg %p158
      $region22: #{tpu_custom_call.1} parent=5 // pred_check_branch
        %161 = sbr.rel (%p159) target = $region24
      $region23: #{tpu_custom_call.1} parent=5 // pred_region
        // Predicated region
        $region25: #{tpu_custom_call.1} parent=23 // pred_check
          %p162 = pneg %p37
        $region26: #{tpu_custom_call.1} parent=23 // pred_check_branch
          %164 = sbr.rel (%p162) target = $region28
        $region27: #{tpu_custom_call.1} parent=23 // pred_region
          %s165 = smul.u32 64, %s17
          %p166 = scmp.lt.s32.totalorder %s165, 127
          %s167 = scalar_select %p166, %s165, 127
          %s168 = smul.addr %s167, 8
          %s169 = scalar_lea.vmem %s0, %s168
          %s170 = smul.u32 64, %s17
        $region28: #{tpu_custom_call.1} parent=23 // pred_fallthru
          _
      $region24: #{tpu_custom_call.1} parent=5 // pred_fallthru
        _
      %p171 = scmp.le.s32.totalorder 1, %s17
      %p172 = scmp.lt.s32.totalorder %s17, 3
      %p173 = pnand %p171, %p172
      %p174 = pneg %p173
      // Predicated region
      $region29: #{tpu_custom_call.1} parent=5 // pred_check
        _
      $region30: #{tpu_custom_call.1} parent=5 // pred_check_branch
        %176 = sbr.rel (%p173) target = $region32
      $region31: #{tpu_custom_call.1} parent=5 // pred_region
        %s177 = ssub.s32 %s17, 1
        %s178 = smul.u32 64, %s22
        %p179 = scmp.lt.s32.totalorder %s178, 127
        %s180 = scalar_select %p179, %s178, 127
        %s181 = smul.addr %s180, 8
        %s182 = scalar_lea.vmem %s0, %s181
        %p183 = pneg %p43
        %p184 = pneg %p40
        %p185 = pneg %p64
        %p186 = pneg %p61
        %p187 = pneg %p85
        %p188 = pneg %p82
        %p189 = pneg %p111
        %p190 = pneg %p108
        %s191 = sand.u32 %s98, 1
        %s192 = scalar_lea.sflag [#allocation3], %s191
        %s193 = sand.u32 %s98, 1
        %s194 = smul.addr %s193, 256
        %s195 = scalar_lea.vmem [#allocation2], %s194
        %p196 = pneg %p137
        %p197 = pneg %p134
        %s198 = sand.u32 %s124, 1
        %s199 = scalar_lea.sflag [#allocation5], %s198
        %s200 = sand.u32 %s124, 1
        %s201 = smul.addr %s200, 8
        %s202 = scalar_lea.vmem [#allocation4], %s201
        %s203 = smul.u32 64, %s22
        %p204 = scmp.lt.s32.totalorder %s203, 127
        %s205 = scalar_select %p204, %s203, 127
        %s206 = smul.addr %s205, 8
        %s207 = scalar_lea.vmem %s0, %s206
        %s208 = smul.u32 64, %s22
        %s209 = smul.u32 64, %s22
        %v210 = vld [vmem:[%s207] sm:$0xff]
        %v211 = vld [vmem:[%s207 + $0x8] sm:$0xff]
        %v212 = vld [vmem:[%s207 + $0x10] sm:$0xff]
        %v213 = vld [vmem:[%s207 + $0x18] sm:$0xff]
        %v214 = vld [vmem:[%s207 + $0x20] sm:$0xff]
        %v215 = vld [vmem:[%s207 + $0x28] sm:$0xff]
        %v216 = vld [vmem:[%s207 + $0x30] sm:$0xff]
        %v217 = vld [vmem:[%s207 + $0x38] sm:$0xff]
        %v218 = vld [vmem:[%s207 + $0x40] sm:$0xff]
        %v219 = vld [vmem:[%s207 + $0x48] sm:$0xff]
        %v220 = vld [vmem:[%s207 + $0x50] sm:$0xff]
        %v221 = vld [vmem:[%s207 + $0x58] sm:$0xff]
        %v222 = vld [vmem:[%s207 + $0x60] sm:$0xff]
        %v223 = vld [vmem:[%s207 + $0x68] sm:$0xff]
        %v224 = vld [vmem:[%s207 + $0x70] sm:$0xff]
        %v225 = vld [vmem:[%s207 + $0x78] sm:$0xff]
        %v226 = vld [vmem:[%s207 + $0x80] sm:$0xff]
        %v227 = vld [vmem:[%s207 + $0x88] sm:$0xff]
        %v228 = vld [vmem:[%s207 + $0x90] sm:$0xff]
        %v229 = vld [vmem:[%s207 + $0x98] sm:$0xff]
        %v230 = vld [vmem:[%s207 + $0xa0] sm:$0xff]
        %v231 = vld [vmem:[%s207 + $0xa8] sm:$0xff]
        %v232 = vld [vmem:[%s207 + $0xb0] sm:$0xff]
        %v233 = vld [vmem:[%s207 + $0xb8] sm:$0xff]
        %v234 = vld [vmem:[%s207 + $0xc0] sm:$0xff]
        %v235 = vld [vmem:[%s207 + $0xc8] sm:$0xff]
        %v236 = vld [vmem:[%s207 + $0xd0] sm:$0xff]
        %v237 = vld [vmem:[%s207 + $0xd8] sm:$0xff]
        %v238 = vld [vmem:[%s207 + $0xe0] sm:$0xff]
        %v239 = vld [vmem:[%s207 + $0xe8] sm:$0xff]
        %v240 = vld [vmem:[%s207 + $0xf0] sm:$0xff]
        %v241 = vld [vmem:[%s207 + $0xf8] sm:$0xff]
        %v242 = vld [vmem:[%s207 + $0x100] sm:$0xff]
        %v243 = vld [vmem:[%s207 + $0x108] sm:$0xff]
        %v244 = vld [vmem:[%s207 + $0x110] sm:$0xff]
        %v245 = vld [vmem:[%s207 + $0x118] sm:$0xff]
        %v246 = vld [vmem:[%s207 + $0x120] sm:$0xff]
        %v247 = vld [vmem:[%s207 + $0x128] sm:$0xff]
        %v248 = vld [vmem:[%s207 + $0x130] sm:$0xff]
        %v249 = vld [vmem:[%s207 + $0x138] sm:$0xff]
        %v250 = vld [vmem:[%s207 + $0x140] sm:$0xff]
        %v251 = vld [vmem:[%s207 + $0x148] sm:$0xff]
        %v252 = vld [vmem:[%s207 + $0x150] sm:$0xff]
        %v253 = vld [vmem:[%s207 + $0x158] sm:$0xff]
        %v254 = vld [vmem:[%s207 + $0x160] sm:$0xff]
        %v255 = vld [vmem:[%s207 + $0x168] sm:$0xff]
        %v256 = vld [vmem:[%s207 + $0x170] sm:$0xff]
        %v257 = vld [vmem:[%s207 + $0x178] sm:$0xff]
        %v258 = vld [vmem:[%s207 + $0x180] sm:$0xff]
        %v259 = vld [vmem:[%s207 + $0x188] sm:$0xff]
        %v260 = vld [vmem:[%s207 + $0x190] sm:$0xff]
        %v261 = vld [vmem:[%s207 + $0x198] sm:$0xff]
        %v262 = vld [vmem:[%s207 + $0x1a0] sm:$0xff]
        %v263 = vld [vmem:[%s207 + $0x1a8] sm:$0xff]
        %v264 = vld [vmem:[%s207 + $0x1b0] sm:$0xff]
        %v265 = vld [vmem:[%s207 + $0x1b8] sm:$0xff]
        %v266 = vld [vmem:[%s207 + $0x1c0] sm:$0xff]
        %v267 = vld [vmem:[%s207 + $0x1c8] sm:$0xff]
        %v268 = vld [vmem:[%s207 + $0x1d0] sm:$0xff]
        %v269 = vld [vmem:[%s207 + $0x1d8] sm:$0xff]
        %v270 = vld [vmem:[%s207 + $0x1e0] sm:$0xff]
        %v271 = vld [vmem:[%s207 + $0x1e8] sm:$0xff]
        %v272 = vld [vmem:[%s207 + $0x1f0] sm:$0xff]
        %v273 = vld [vmem:[%s207 + $0x1f8] sm:$0xff]
        %v274 = vld [vmem:[%s1] sm:$0xff]
        %v275 = vld [vmem:[%s1 + $0x8] sm:$0xff]
        %v276 = vld [vmem:[%s1 + $0x10] sm:$0xff]
        %v277 = vld [vmem:[%s1 + $0x18] sm:$0xff]
        %v278 = vld [vmem:[%s2] sm:$0x1]
        %v280 = vlaneseq
        %v281 = vshrl.u32 %v280, 7
        %v282 = vsub.s32 0, %v281
        %v283 = vrot.slane %v278, %v282
        %vm285 = vcmask 261120
        %v287 = vsel %vm285, %v210, 0
        %v290 = vsel %vm285, %v211, 0
        %v293 = vsel %vm285, %v212, 0
        %v296 = vsel %vm285, %v213, 0
        %v299 = vsel %vm285, %v214, 0
        %v302 = vsel %vm285, %v215, 0
        %v305 = vsel %vm285, %v216, 0
        %v308 = vsel %vm285, %v217, 0
        %v311 = vsel %vm285, %v218, 0
        %v314 = vsel %vm285, %v219, 0
        %v317 = vsel %vm285, %v220, 0
        %v320 = vsel %vm285, %v221, 0
        %v323 = vsel %vm285, %v222, 0
        %v326 = vsel %vm285, %v223, 0
        %v329 = vsel %vm285, %v224, 0
        %v332 = vsel %vm285, %v225, 0
        %v335 = vsel %vm285, %v226, 0
        %v338 = vsel %vm285, %v227, 0
        %v341 = vsel %vm285, %v228, 0
        %v344 = vsel %vm285, %v229, 0
        %v347 = vsel %vm285, %v230, 0
        %v350 = vsel %vm285, %v231, 0
        %v353 = vsel %vm285, %v232, 0
        %v356 = vsel %vm285, %v233, 0
        %v359 = vsel %vm285, %v234, 0
        %v362 = vsel %vm285, %v235, 0
        %v365 = vsel %vm285, %v236, 0
        %v368 = vsel %vm285, %v237, 0
        %v371 = vsel %vm285, %v238, 0
        %v374 = vsel %vm285, %v239, 0
        %v377 = vsel %vm285, %v240, 0
        %v380 = vsel %vm285, %v241, 0
        %v383 = vsel %vm285, %v242, 0
        %v386 = vsel %vm285, %v243, 0
        %v389 = vsel %vm285, %v244, 0
        %v392 = vsel %vm285, %v245, 0
        %v395 = vsel %vm285, %v246, 0
        %v398 = vsel %vm285, %v247, 0
        %v401 = vsel %vm285, %v248, 0
        %v404 = vsel %vm285, %v249, 0
        %v407 = vsel %vm285, %v250, 0
        %v410 = vsel %vm285, %v251, 0
        %v413 = vsel %vm285, %v252, 0
        %v416 = vsel %vm285, %v253, 0
        %v419 = vsel %vm285, %v254, 0
        %v422 = vsel %vm285, %v255, 0
        %v425 = vsel %vm285, %v256, 0
        %v428 = vsel %vm285, %v257, 0
        %v431 = vsel %vm285, %v258, 0
        %v434 = vsel %vm285, %v259, 0
        %v437 = vsel %vm285, %v260, 0
        %v440 = vsel %vm285, %v261, 0
        %v443 = vsel %vm285, %v262, 0
        %v446 = vsel %vm285, %v263, 0
        %v449 = vsel %vm285, %v264, 0
        %v452 = vsel %vm285, %v265, 0
        %v455 = vsel %vm285, %v266, 0
        %v458 = vsel %vm285, %v267, 0
        %v461 = vsel %vm285, %v268, 0
        %v464 = vsel %vm285, %v269, 0
        %v467 = vsel %vm285, %v270, 0
        %v470 = vsel %vm285, %v271, 0
        %v473 = vsel %vm285, %v272, 0
        %v476 = vsel %vm285, %v273, 0
        %478 = vmatprep.subr.mxu0 0.0
        %479 = vmatpush1.msra.mxu0 %v274
        %480 = vmatprep.subr.mxu0 0.0
        %481 = vmatpush1.msra.mxu0 %v275
        %482 = vmatprep.subr.mxu0 0.0
        %483 = vmatpush1.msra.mxu0 %v276
        %484 = vmatprep.subr.mxu0 0.0
        %485 = vmatpush1.msra.mxu0 %v277
        %486 = vmatprep.subr.mxu0 0.0
        %487 = vmatpush1.msra.mxu0 0.0
        %488 = vmatprep.subr.mxu0 0.0
        %489 = vmatpush1.msra.mxu0 0.0
        %490 = vmatprep.subr.mxu0 0.0
        %491 = vmatpush1.msra.mxu0 0.0
        %492 = vmatprep.subr.mxu0 0.0
        %493 = vmatpush1.msra.mxu0 0.0
        %494 = vmatprep.subr.mxu0 0.0
        %495 = vmatpush1.msra.mxu0 0.0
        %496 = vmatprep.subr.mxu0 0.0
        %497 = vmatpush1.msra.mxu0 0.0
        %498 = vmatprep.subr.mxu0 0.0
        %499 = vmatpush1.msra.mxu0 0.0
        %500 = vmatprep.subr.mxu0 0.0
        %501 = vmatpush1.msra.mxu0 0.0
        %502 = vmatprep.subr.mxu0 0.0
        %503 = vmatpush1.msra.mxu0 0.0
        %504 = vmatprep.subr.mxu0 0.0
        %505 = vmatpush1.msra.mxu0 0.0
        %506 = vmatprep.subr.mxu0 0.0
        %507 = vmatpush1.msra.mxu0 0.0
        %508 = vmatprep.subr.mxu0 0.0
        %509 = vmatpush1.msra.mxu0 0.0
        %510 = vmatprep.subr.mxu0 0.0
        %511 = vmatpush1.msra.mxu0 0.0
        %512 = vmatprep.subr.mxu0 0.0
        %513 = vmatpush1.msra.mxu0 0.0
        %514 = vmatprep.subr.mxu0 0.0
        %515 = vmatpush1.msra.mxu0 0.0
        %516 = vmatprep.subr.mxu0 0.0
        %517 = vmatpush1.msra.mxu0 0.0
        %518 = vmatprep.subr.mxu0 0.0
        %519 = vmatpush1.msra.mxu0 0.0
        %520 = vmatprep.subr.mxu0 0.0
        %521 = vmatpush1.msra.mxu0 0.0
        %522 = vmatprep.subr.mxu0 0.0
        %523 = vmatpush1.msra.mxu0 0.0
        %524 = vmatprep.subr.mxu0 0.0
        %525 = vmatpush1.msra.mxu0 0.0
        %526 = vmatprep.subr.mxu0 0.0
        %527 = vmatpush1.msra.mxu0 0.0
        %528 = vmatprep.subr.mxu0 0.0
        %529 = vmatpush1.msra.mxu0 0.0
        %530 = vmatprep.subr.mxu0 0.0
        %531 = vmatpush1.msra.mxu0 0.0
        %532 = vmatprep.subr.mxu0 0.0
        %533 = vmatpush1.msra.mxu0 0.0
        %534 = vmatprep.subr.mxu0 0.0
        %535 = vmatpush1.msra.mxu0 0.0
        %536 = vmatprep.subr.mxu0 0.0
        %537 = vmatpush1.msra.mxu0 0.0
        %538 = vmatprep.subr.mxu0 0.0
        %539 = vmatpush1.msra.mxu0 0.0
        %540 = vmatprep.subr.mxu0 0.0
        %541 = vmatpush1.msra.mxu0 0.0
        %542 = vmatprep.mubr.f32.mxu0 0.0
        %543 = vmatmul.mubr.f32.gmra.mrb[0].mxu0 %v287
        %v544 = vpop.f32.mrb[0].mxu0
        %v545 = vadd.f32 %v283, %v544
        %v546 = vpop.f32.mrb[0].mxu0
        %547 = vmatprep.mubr.f32.mxu0 0.0
        %548 = vmatmul.mubr.f32.gmra.mrb[0].mxu0 %v290
        %v549 = vpop.f32.mrb[0].mxu0
        %v550 = vadd.f32 %v283, %v549
        %v551 = vpop.f32.mrb[0].mxu0
        %552 = vmatprep.mubr.f32.mxu0 0.0
        %553 = vmatmul.mubr.f32.gmra.mrb[0].mxu0 %v293
        %v554 = vpop.f32.mrb[0].mxu0
        %v555 = vadd.f32 %v283, %v554
        %v556 = vpop.f32.mrb[0].mxu0
        %557 = vmatprep.mubr.f32.mxu0 0.0
        %558 = vmatmul.mubr.f32.gmra.mrb[0].mxu0 %v296
        %v559 = vpop.f32.mrb[0].mxu0
        %v560 = vadd.f32 %v283, %v559
        %v561 = vpop.f32.mrb[0].mxu0
        %562 = vmatprep.mubr.f32.mxu0 0.0
        %563 = vmatmul.mubr.f32.gmra.mrb[0].mxu0 %v299
        %v564 = vpop.f32.mrb[0].mxu0
        %v565 = vadd.f32 %v283, %v564
        %v566 = vpop.f32.mrb[0].mxu0
        %567 = vmatprep.mubr.f32.mxu0 0.0
        %568 = vmatmul.mubr.f32.gmra.mrb[0].mxu0 %v302
        %v569 = vpop.f32.mrb[0].mxu0
        %v570 = vadd.f32 %v283, %v569
        %v571 = vpop.f32.mrb[0].mxu0
        %572 = vmatprep.mubr.f32.mxu0 0.0
        %573 = vmatmul.mubr.f32.gmra.mrb[0].mxu0 %v305
        %v574 = vpop.f32.mrb[0].mxu0
        %v575 = vadd.f32 %v283, %v574
        %v576 = vpop.f32.mrb[0].mxu0
        %577 = vmatprep.mubr.f32.mxu0 0.0
        %578 = vmatmul.mubr.f32.gmra.mrb[0].mxu0 %v308
        %v579 = vpop.f32.mrb[0].mxu0
        %v580 = vadd.f32 %v283, %v579
        %v581 = vpop.f32.mrb[0].mxu0
        %582 = vmatprep.mubr.f32.mxu0 0.0
        %583 = vmatmul.mubr.f32.gmra.mrb[0].mxu0 %v311
        %v584 = vpop.f32.mrb[0].mxu0
        %v585 = vadd.f32 %v283, %v584
        %v586 = vpop.f32.mrb[0].mxu0
        %587 = vmatprep.mubr.f32.mxu0 0.0
        %588 = vmatmul.mubr.f32.gmra.mrb[0].mxu0 %v314
        %v589 = vpop.f32.mrb[0].mxu0
        %v590 = vadd.f32 %v283, %v589
        %v591 = vpop.f32.mrb[0].mxu0
        %592 = vmatprep.mubr.f32.mxu0 0.0
        %593 = vmatmul.mubr.f32.gmra.mrb[0].mxu0 %v317
        %v594 = vpop.f32.mrb[0].mxu0
        %v595 = vadd.f32 %v283, %v594
        %v596 = vpop.f32.mrb[0].mxu0
        %597 = vmatprep.mubr.f32.mxu0 0.0
        %598 = vmatmul.mubr.f32.gmra.mrb[0].mxu0 %v320
        %v599 = vpop.f32.mrb[0].mxu0
        %v600 = vadd.f32 %v283, %v599
        %v601 = vpop.f32.mrb[0].mxu0
        %602 = vmatprep.mubr.f32.mxu0 0.0
        %603 = vmatmul.mubr.f32.gmra.mrb[0].mxu0 %v323
        %v604 = vpop.f32.mrb[0].mxu0
        %v605 = vadd.f32 %v283, %v604
        %v606 = vpop.f32.mrb[0].mxu0
        %607 = vmatprep.mubr.f32.mxu0 0.0
        %608 = vmatmul.mubr.f32.gmra.mrb[0].mxu0 %v326
        %v609 = vpop.f32.mrb[0].mxu0
        %v610 = vadd.f32 %v283, %v609
        %v611 = vpop.f32.mrb[0].mxu0
        %612 = vmatprep.mubr.f32.mxu0 0.0
        %613 = vmatmul.mubr.f32.gmra.mrb[0].mxu0 %v329
        %v614 = vpop.f32.mrb[0].mxu0
        %v615 = vadd.f32 %v283, %v614
        %v616 = vpop.f32.mrb[0].mxu0
        %617 = vmatprep.mubr.f32.mxu0 0.0
        %618 = vmatmul.mubr.f32.gmra.mrb[0].mxu0 %v332
        %v619 = vpop.f32.mrb[0].mxu0
        %v620 = vadd.f32 %v283, %v619
        %v621 = vpop.f32.mrb[0].mxu0
        %622 = vmatprep.mubr.f32.mxu0 0.0
        %623 = vmatmul.mubr.f32.gmra.mrb[0].mxu0 %v335
        %v624 = vpop.f32.mrb[0].mxu0
        %v625 = vadd.f32 %v283, %v624
        %v626 = vpop.f32.mrb[0].mxu0
        %627 = vmatprep.mubr.f32.mxu0 0.0
        %628 = vmatmul.mubr.f32.gmra.mrb[0].mxu0 %v338
        %v629 = vpop.f32.mrb[0].mxu0
        %v630 = vadd.f32 %v283, %v629
        %v631 = vpop.f32.mrb[0].mxu0
        %632 = vmatprep.mubr.f32.mxu0 0.0
        %633 = vmatmul.mubr.f32.gmra.mrb[0].mxu0 %v341
        %v634 = vpop.f32.mrb[0].mxu0
        %v635 = vadd.f32 %v283, %v634
        %v636 = vpop.f32.mrb[0].mxu0
        %637 = vmatprep.mubr.f32.mxu0 0.0
        %638 = vmatmul.mubr.f32.gmra.mrb[0].mxu0 %v344
        %v639 = vpop.f32.mrb[0].mxu0
        %v640 = vadd.f32 %v283, %v639
        %v641 = vpop.f32.mrb[0].mxu0
        %642 = vmatprep.mubr.f32.mxu0 0.0
        %643 = vmatmul.mubr.f32.gmra.mrb[0].mxu0 %v347
        %v644 = vpop.f32.mrb[0].mxu0
        %v645 = vadd.f32 %v283, %v644
        %v646 = vpop.f32.mrb[0].mxu0
        %647 = vmatprep.mubr.f32.mxu0 0.0
        %648 = vmatmul.mubr.f32.gmra.mrb[0].mxu0 %v350
        %v649 = vpop.f32.mrb[0].mxu0
        %v650 = vadd.f32 %v283, %v649
        %v651 = vpop.f32.mrb[0].mxu0
        %652 = vmatprep.mubr.f32.mxu0 0.0
        %653 = vmatmul.mubr.f32.gmra.mrb[0].mxu0 %v353
        %v654 = vpop.f32.mrb[0].mxu0
        %v655 = vadd.f32 %v283, %v654
        %v656 = vpop.f32.mrb[0].mxu0
        %657 = vmatprep.mubr.f32.mxu0 0.0
        %658 = vmatmul.mubr.f32.gmra.mrb[0].mxu0 %v356
        %v659 = vpop.f32.mrb[0].mxu0
        %v660 = vadd.f32 %v283, %v659
        %v661 = vpop.f32.mrb[0].mxu0
        %662 = vmatprep.mubr.f32.mxu0 0.0
        %663 = vmatmul.mubr.f32.gmra.mrb[0].mxu0 %v359
        %v664 = vpop.f32.mrb[0].mxu0
        %v665 = vadd.f32 %v283, %v664
        %v666 = vpop.f32.mrb[0].mxu0
        %667 = vmatprep.mubr.f32.mxu0 0.0
        %668 = vmatmul.mubr.f32.gmra.mrb[0].mxu0 %v362
        %v669 = vpop.f32.mrb[0].mxu0
        %v670 = vadd.f32 %v283, %v669
        %v671 = vpop.f32.mrb[0].mxu0
        %672 = vmatprep.mubr.f32.mxu0 0.0
        %673 = vmatmul.mubr.f32.gmra.mrb[0].mxu0 %v365
        %v674 = vpop.f32.mrb[0].mxu0
        %v675 = vadd.f32 %v283, %v674
        %v676 = vpop.f32.mrb[0].mxu0
        %677 = vmatprep.mubr.f32.mxu0 0.0
        %678 = vmatmul.mubr.f32.gmra.mrb[0].mxu0 %v368
        %v679 = vpop.f32.mrb[0].mxu0
        %v680 = vadd.f32 %v283, %v679
        %v681 = vpop.f32.mrb[0].mxu0
        %682 = vmatprep.mubr.f32.mxu0 0.0
        %683 = vmatmul.mubr.f32.gmra.mrb[0].mxu0 %v371
        %v684 = vpop.f32.mrb[0].mxu0
        %v685 = vadd.f32 %v283, %v684
        %v686 = vpop.f32.mrb[0].mxu0
        %687 = vmatprep.mubr.f32.mxu0 0.0
        %688 = vmatmul.mubr.f32.gmra.mrb[0].mxu0 %v374
        %v689 = vpop.f32.mrb[0].mxu0
        %v690 = vadd.f32 %v283, %v689
        %v691 = vpop.f32.mrb[0].mxu0
        %692 = vmatprep.mubr.f32.mxu0 0.0
        %693 = vmatmul.mubr.f32.gmra.mrb[0].mxu0 %v377
        %v694 = vpop.f32.mrb[0].mxu0
        %v695 = vadd.f32 %v283, %v694
        %v696 = vpop.f32.mrb[0].mxu0
        %697 = vmatprep.mubr.f32.mxu0 0.0
        %698 = vmatmul.mubr.f32.gmra.mrb[0].mxu0 %v380
        %v699 = vpop.f32.mrb[0].mxu0
        %v700 = vadd.f32 %v283, %v699
        %v701 = vpop.f32.mrb[0].mxu0
        %702 = vmatprep.mubr.f32.mxu0 0.0
        %703 = vmatmul.mubr.f32.gmra.mrb[0].mxu0 %v383
        %v704 = vpop.f32.mrb[0].mxu0
        %v705 = vadd.f32 %v283, %v704
        %v706 = vpop.f32.mrb[0].mxu0
        %707 = vmatprep.mubr.f32.mxu0 0.0
        %708 = vmatmul.mubr.f32.gmra.mrb[0].mxu0 %v386
        %v709 = vpop.f32.mrb[0].mxu0
        %v710 = vadd.f32 %v283, %v709
        %v711 = vpop.f32.mrb[0].mxu0
        %712 = vmatprep.mubr.f32.mxu0 0.0
        %713 = vmatmul.mubr.f32.gmra.mrb[0].mxu0 %v389
        %v714 = vpop.f32.mrb[0].mxu0
        %v715 = vadd.f32 %v283, %v714
        %v716 = vpop.f32.mrb[0].mxu0
        %717 = vmatprep.mubr.f32.mxu0 0.0
        %718 = vmatmul.mubr.f32.gmra.mrb[0].mxu0 %v392
        %v719 = vpop.f32.mrb[0].mxu0
        %v720 = vadd.f32 %v283, %v719
        %v721 = vpop.f32.mrb[0].mxu0
        %722 = vmatprep.mubr.f32.mxu0 0.0
        %723 = vmatmul.mubr.f32.gmra.mrb[0].mxu0 %v395
        %v724 = vpop.f32.mrb[0].mxu0
        %v725 = vadd.f32 %v283, %v724
        %v726 = vpop.f32.mrb[0].mxu0
        %727 = vmatprep.mubr.f32.mxu0 0.0
        %728 = vmatmul.mubr.f32.gmra.mrb[0].mxu0 %v398
        %v729 = vpop.f32.mrb[0].mxu0
        %v730 = vadd.f32 %v283, %v729
        %v731 = vpop.f32.mrb[0].mxu0
        %732 = vmatprep.mubr.f32.mxu0 0.0
        %733 = vmatmul.mubr.f32.gmra.mrb[0].mxu0 %v401
        %v734 = vpop.f32.mrb[0].mxu0
        %v735 = vadd.f32 %v283, %v734
        %v736 = vpop.f32.mrb[0].mxu0
        %737 = vmatprep.mubr.f32.mxu0 0.0
        %738 = vmatmul.mubr.f32.gmra.mrb[0].mxu0 %v404
        %v739 = vpop.f32.mrb[0].mxu0
        %v740 = vadd.f32 %v283, %v739
        %v741 = vpop.f32.mrb[0].mxu0
        %742 = vmatprep.mubr.f32.mxu0 0.0
        %743 = vmatmul.mubr.f32.gmra.mrb[0].mxu0 %v407
        %v744 = vpop.f32.mrb[0].mxu0
        %v745 = vadd.f32 %v283, %v744
        %v746 = vpop.f32.mrb[0].mxu0
        %747 = vmatprep.mubr.f32.mxu0 0.0
        %748 = vmatmul.mubr.f32.gmra.mrb[0].mxu0 %v410
        %v749 = vpop.f32.mrb[0].mxu0
        %v750 = vadd.f32 %v283, %v749
        %v751 = vpop.f32.mrb[0].mxu0
        %752 = vmatprep.mubr.f32.mxu0 0.0
        %753 = vmatmul.mubr.f32.gmra.mrb[0].mxu0 %v413
        %v754 = vpop.f32.mrb[0].mxu0
        %v755 = vadd.f32 %v283, %v754
        %v756 = vpop.f32.mrb[0].mxu0
        %757 = vmatprep.mubr.f32.mxu0 0.0
        %758 = vmatmul.mubr.f32.gmra.mrb[0].mxu0 %v416
        %v759 = vpop.f32.mrb[0].mxu0
        %v760 = vadd.f32 %v283, %v759
        %v761 = vpop.f32.mrb[0].mxu0
        %762 = vmatprep.mubr.f32.mxu0 0.0
        %763 = vmatmul.mubr.f32.gmra.mrb[0].mxu0 %v419
        %v764 = vpop.f32.mrb[0].mxu0
        %v765 = vadd.f32 %v283, %v764
        %v766 = vpop.f32.mrb[0].mxu0
        %767 = vmatprep.mubr.f32.mxu0 0.0
        %768 = vmatmul.mubr.f32.gmra.mrb[0].mxu0 %v422
        %v769 = vpop.f32.mrb[0].mxu0
        %v770 = vadd.f32 %v283, %v769
        %v771 = vpop.f32.mrb[0].mxu0
        %772 = vmatprep.mubr.f32.mxu0 0.0
        %773 = vmatmul.mubr.f32.gmra.mrb[0].mxu0 %v425
        %v774 = vpop.f32.mrb[0].mxu0
        %v775 = vadd.f32 %v283, %v774
        %v776 = vpop.f32.mrb[0].mxu0
        %777 = vmatprep.mubr.f32.mxu0 0.0
        %778 = vmatmul.mubr.f32.gmra.mrb[0].mxu0 %v428
        %v779 = vpop.f32.mrb[0].mxu0
        %v780 = vadd.f32 %v283, %v779
        %v781 = vpop.f32.mrb[0].mxu0
        %782 = vmatprep.mubr.f32.mxu0 0.0
        %783 = vmatmul.mubr.f32.gmra.mrb[0].mxu0 %v431
        %v784 = vpop.f32.mrb[0].mxu0
        %v785 = vadd.f32 %v283, %v784
        %v786 = vpop.f32.mrb[0].mxu0
        %787 = vmatprep.mubr.f32.mxu0 0.0
        %788 = vmatmul.mubr.f32.gmra.mrb[0].mxu0 %v434
        %v789 = vpop.f32.mrb[0].mxu0
        %v790 = vadd.f32 %v283, %v789
        %v791 = vpop.f32.mrb[0].mxu0
        %792 = vmatprep.mubr.f32.mxu0 0.0
        %793 = vmatmul.mubr.f32.gmra.mrb[0].mxu0 %v437
        %v794 = vpop.f32.mrb[0].mxu0
        %v795 = vadd.f32 %v283, %v794
        %v796 = vpop.f32.mrb[0].mxu0
        %797 = vmatprep.mubr.f32.mxu0 0.0
        %798 = vmatmul.mubr.f32.gmra.mrb[0].mxu0 %v440
        %v799 = vpop.f32.mrb[0].mxu0
        %v800 = vadd.f32 %v283, %v799
        %v801 = vpop.f32.mrb[0].mxu0
        %802 = vmatprep.mubr.f32.mxu0 0.0
        %803 = vmatmul.mubr.f32.gmra.mrb[0].mxu0 %v443
        %v804 = vpop.f32.mrb[0].mxu0
        %v805 = vadd.f32 %v283, %v804
        %v806 = vpop.f32.mrb[0].mxu0
        %807 = vmatprep.mubr.f32.mxu0 0.0
        %808 = vmatmul.mubr.f32.gmra.mrb[0].mxu0 %v446
        %v809 = vpop.f32.mrb[0].mxu0
        %v810 = vadd.f32 %v283, %v809
        %v811 = vpop.f32.mrb[0].mxu0
        %812 = vmatprep.mubr.f32.mxu0 0.0
        %813 = vmatmul.mubr.f32.gmra.mrb[0].mxu0 %v449
        %v814 = vpop.f32.mrb[0].mxu0
        %v815 = vadd.f32 %v283, %v814
        %v816 = vpop.f32.mrb[0].mxu0
        %817 = vmatprep.mubr.f32.mxu0 0.0
        %818 = vmatmul.mubr.f32.gmra.mrb[0].mxu0 %v452
        %v819 = vpop.f32.mrb[0].mxu0
        %v820 = vadd.f32 %v283, %v819
        %v821 = vpop.f32.mrb[0].mxu0
        %822 = vmatprep.mubr.f32.mxu0 0.0
        %823 = vmatmul.mubr.f32.gmra.mrb[0].mxu0 %v455
        %v824 = vpop.f32.mrb[0].mxu0
        %v825 = vadd.f32 %v283, %v824
        %v826 = vpop.f32.mrb[0].mxu0
        %827 = vmatprep.mubr.f32.mxu0 0.0
        %828 = vmatmul.mubr.f32.gmra.mrb[0].mxu0 %v458
        %v829 = vpop.f32.mrb[0].mxu0
        %v830 = vadd.f32 %v283, %v829
        %v831 = vpop.f32.mrb[0].mxu0
        %832 = vmatprep.mubr.f32.mxu0 0.0
        %833 = vmatmul.mubr.f32.gmra.mrb[0].mxu0 %v461
        %v834 = vpop.f32.mrb[0].mxu0
        %v835 = vadd.f32 %v283, %v834
        %v836 = vpop.f32.mrb[0].mxu0
        %837 = vmatprep.mubr.f32.mxu0 0.0
        %838 = vmatmul.mubr.f32.gmra.mrb[0].mxu0 %v464
        %v839 = vpop.f32.mrb[0].mxu0
        %v840 = vadd.f32 %v283, %v839
        %v841 = vpop.f32.mrb[0].mxu0
        %842 = vmatprep.mubr.f32.mxu0 0.0
        %843 = vmatmul.mubr.f32.gmra.mrb[0].mxu0 %v467
        %v844 = vpop.f32.mrb[0].mxu0
        %v845 = vadd.f32 %v283, %v844
        %v846 = vpop.f32.mrb[0].mxu0
        %847 = vmatprep.mubr.f32.mxu0 0.0
        %848 = vmatmul.mubr.f32.gmra.mrb[0].mxu0 %v470
        %v849 = vpop.f32.mrb[0].mxu0
        %v850 = vadd.f32 %v283, %v849
        %v851 = vpop.f32.mrb[0].mxu0
        %852 = vmatprep.mubr.f32.mxu0 0.0
        %853 = vmatmul.mubr.f32.gmra.mrb[0].mxu0 %v473
        %v854 = vpop.f32.mrb[0].mxu0
        %v855 = vadd.f32 %v283, %v854
        %v856 = vpop.f32.mrb[0].mxu0
        %857 = vmatprep.mubr.f32.mxu0 0.0
        %858 = vmatmul.mubr.f32.gmra.mrb[0].mxu0 %v476
        %v859 = vpop.f32.mrb[0].mxu0
        %v860 = vadd.f32 %v283, %v859
        %v861 = vpop.f32.mrb[0].mxu0
        %862 = vdwg.mxu0
        %863 = vmax.xlane.f32.xlu0 %v545
        %v864 = vpop.xlane.xlu0 %863
        %865 = vmax.xlane.f32.xlu0 %v550
        %v866 = vpop.xlane.xlu0 %865
        %867 = vmax.xlane.f32.xlu0 %v555
        %v868 = vpop.xlane.xlu0 %867
        %869 = vmax.xlane.f32.xlu0 %v560
        %v870 = vpop.xlane.xlu0 %869
        %871 = vmax.xlane.f32.xlu0 %v565
        %v872 = vpop.xlane.xlu0 %871
        %873 = vmax.xlane.f32.xlu0 %v570
        %v874 = vpop.xlane.xlu0 %873
        %875 = vmax.xlane.f32.xlu0 %v575
        %v876 = vpop.xlane.xlu0 %875
        %877 = vmax.xlane.f32.xlu0 %v580
        %v878 = vpop.xlane.xlu0 %877
        %879 = vmax.xlane.f32.xlu0 %v585
        %v880 = vpop.xlane.xlu0 %879
        %881 = vmax.xlane.f32.xlu0 %v590
        %v882 = vpop.xlane.xlu0 %881
        %883 = vmax.xlane.f32.xlu0 %v595
        %v884 = vpop.xlane.xlu0 %883
        %885 = vmax.xlane.f32.xlu0 %v600
        %v886 = vpop.xlane.xlu0 %885
        %887 = vmax.xlane.f32.xlu0 %v605
        %v888 = vpop.xlane.xlu0 %887
        %889 = vmax.xlane.f32.xlu0 %v610
        %v890 = vpop.xlane.xlu0 %889
        %891 = vmax.xlane.f32.xlu0 %v615
        %v892 = vpop.xlane.xlu0 %891
        %893 = vmax.xlane.f32.xlu0 %v620
        %v894 = vpop.xlane.xlu0 %893
        %895 = vmax.xlane.f32.xlu0 %v625
        %v896 = vpop.xlane.xlu0 %895
        %897 = vmax.xlane.f32.xlu0 %v630
        %v898 = vpop.xlane.xlu0 %897
        %899 = vmax.xlane.f32.xlu0 %v635
        %v900 = vpop.xlane.xlu0 %899
        %901 = vmax.xlane.f32.xlu0 %v640
        %v902 = vpop.xlane.xlu0 %901
        %903 = vmax.xlane.f32.xlu0 %v645
        %v904 = vpop.xlane.xlu0 %903
        %905 = vmax.xlane.f32.xlu0 %v650
        %v906 = vpop.xlane.xlu0 %905
        %907 = vmax.xlane.f32.xlu0 %v655
        %v908 = vpop.xlane.xlu0 %907
        %909 = vmax.xlane.f32.xlu0 %v660
        %v910 = vpop.xlane.xlu0 %909
        %911 = vmax.xlane.f32.xlu0 %v665
        %v912 = vpop.xlane.xlu0 %911
        %913 = vmax.xlane.f32.xlu0 %v670
        %v914 = vpop.xlane.xlu0 %913
        %915 = vmax.xlane.f32.xlu0 %v675
        %v916 = vpop.xlane.xlu0 %915
        %917 = vmax.xlane.f32.xlu0 %v680
        %v918 = vpop.xlane.xlu0 %917
        %919 = vmax.xlane.f32.xlu0 %v685
        %v920 = vpop.xlane.xlu0 %919
        %921 = vmax.xlane.f32.xlu0 %v690
        %v922 = vpop.xlane.xlu0 %921
        %923 = vmax.xlane.f32.xlu0 %v695
        %v924 = vpop.xlane.xlu0 %923
        %925 = vmax.xlane.f32.xlu0 %v700
        %v926 = vpop.xlane.xlu0 %925
        %927 = vmax.xlane.f32.xlu0 %v705
        %v928 = vpop.xlane.xlu0 %927
        %929 = vmax.xlane.f32.xlu0 %v710
        %v930 = vpop.xlane.xlu0 %929
        %931 = vmax.xlane.f32.xlu0 %v715
        %v932 = vpop.xlane.xlu0 %931
        %933 = vmax.xlane.f32.xlu0 %v720
        %v934 = vpop.xlane.xlu0 %933
        %935 = vmax.xlane.f32.xlu0 %v725
        %v936 = vpop.xlane.xlu0 %935
        %937 = vmax.xlane.f32.xlu0 %v730
        %v938 = vpop.xlane.xlu0 %937
        %939 = vmax.xlane.f32.xlu0 %v735
        %v940 = vpop.xlane.xlu0 %939
        %941 = vmax.xlane.f32.xlu0 %v740
        %v942 = vpop.xlane.xlu0 %941
        %943 = vmax.xlane.f32.xlu0 %v745
        %v944 = vpop.xlane.xlu0 %943
        %945 = vmax.xlane.f32.xlu0 %v750
        %v946 = vpop.xlane.xlu0 %945
        %947 = vmax.xlane.f32.xlu0 %v755
        %v948 = vpop.xlane.xlu0 %947
        %949 = vmax.xlane.f32.xlu0 %v760
        %v950 = vpop.xlane.xlu0 %949
        %951 = vmax.xlane.f32.xlu0 %v765
        %v952 = vpop.xlane.xlu0 %951
        %953 = vmax.xlane.f32.xlu0 %v770
        %v954 = vpop.xlane.xlu0 %953
        %955 = vmax.xlane.f32.xlu0 %v775
        %v956 = vpop.xlane.xlu0 %955
        %957 = vmax.xlane.f32.xlu0 %v780
        %v958 = vpop.xlane.xlu0 %957
        %959 = vmax.xlane.f32.xlu0 %v785
        %v960 = vpop.xlane.xlu0 %959
        %961 = vmax.xlane.f32.xlu0 %v790
        %v962 = vpop.xlane.xlu0 %961
        %963 = vmax.xlane.f32.xlu0 %v795
        %v964 = vpop.xlane.xlu0 %963
        %965 = vmax.xlane.f32.xlu0 %v800
        %v966 = vpop.xlane.xlu0 %965
        %967 = vmax.xlane.f32.xlu0 %v805
        %v968 = vpop.xlane.xlu0 %967
        %969 = vmax.xlane.f32.xlu0 %v810
        %v970 = vpop.xlane.xlu0 %969
        %971 = vmax.xlane.f32.xlu0 %v815
        %v972 = vpop.xlane.xlu0 %971
        %973 = vmax.xlane.f32.xlu0 %v820
        %v974 = vpop.xlane.xlu0 %973
        %975 = vmax.xlane.f32.xlu0 %v825
        %v976 = vpop.xlane.xlu0 %975
        %977 = vmax.xlane.f32.xlu0 %v830
        %v978 = vpop.xlane.xlu0 %977
        %979 = vmax.xlane.f32.xlu0 %v835
        %v980 = vpop.xlane.xlu0 %979
        %981 = vmax.xlane.f32.xlu0 %v840
        %v982 = vpop.xlane.xlu0 %981
        %983 = vmax.xlane.f32.xlu0 %v845
        %v984 = vpop.xlane.xlu0 %983
        %985 = vmax.xlane.f32.xlu0 %v850
        %v986 = vpop.xlane.xlu0 %985
        %987 = vmax.xlane.f32.xlu0 %v855
        %v988 = vpop.xlane.xlu0 %987
        %989 = vmax.xlane.f32.xlu0 %v860
        %v990 = vpop.xlane.xlu0 %989
        %v991 = vsub.f32 %v545, %v864
        %v992 = vsub.f32 %v550, %v866
        %v993 = vsub.f32 %v555, %v868
        %v994 = vsub.f32 %v560, %v870
        %v995 = vsub.f32 %v565, %v872
        %v996 = vsub.f32 %v570, %v874
        %v997 = vsub.f32 %v575, %v876
        %v998 = vsub.f32 %v580, %v878
        %v999 = vsub.f32 %v585, %v880
        %v1000 = vsub.f32 %v590, %v882
        %v1001 = vsub.f32 %v595, %v884
        %v1002 = vsub.f32 %v600, %v886
        %v1003 = vsub.f32 %v605, %v888
        %v1004 = vsub.f32 %v610, %v890
        %v1005 = vsub.f32 %v615, %v892
        %v1006 = vsub.f32 %v620, %v894
        %v1007 = vsub.f32 %v625, %v896
        %v1008 = vsub.f32 %v630, %v898
        %v1009 = vsub.f32 %v635, %v900
        %v1010 = vsub.f32 %v640, %v902
        %v1011 = vsub.f32 %v645, %v904
        %v1012 = vsub.f32 %v650, %v906
        %v1013 = vsub.f32 %v655, %v908
        %v1014 = vsub.f32 %v660, %v910
        %v1015 = vsub.f32 %v665, %v912
        %v1016 = vsub.f32 %v670, %v914
        %v1017 = vsub.f32 %v675, %v916
        %v1018 = vsub.f32 %v680, %v918
        %v1019 = vsub.f32 %v685, %v920
        %v1020 = vsub.f32 %v690, %v922
        %v1021 = vsub.f32 %v695, %v924
        %v1022 = vsub.f32 %v700, %v926
        %v1023 = vsub.f32 %v705, %v928
        %v1024 = vsub.f32 %v710, %v930
        %v1025 = vsub.f32 %v715, %v932
        %v1026 = vsub.f32 %v720, %v934
        %v1027 = vsub.f32 %v725, %v936
        %v1028 = vsub.f32 %v730, %v938
        %v1029 = vsub.f32 %v735, %v940
        %v1030 = vsub.f32 %v740, %v942
        %v1031 = vsub.f32 %v745, %v944
        %v1032 = vsub.f32 %v750, %v946
        %v1033 = vsub.f32 %v755, %v948
        %v1034 = vsub.f32 %v760, %v950
        %v1035 = vsub.f32 %v765, %v952
        %v1036 = vsub.f32 %v770, %v954
        %v1037 = vsub.f32 %v775, %v956
        %v1038 = vsub.f32 %v780, %v958
        %v1039 = vsub.f32 %v785, %v960
        %v1040 = vsub.f32 %v790, %v962
        %v1041 = vsub.f32 %v795, %v964
        %v1042 = vsub.f32 %v800, %v966
        %v1043 = vsub.f32 %v805, %v968
        %v1044 = vsub.f32 %v810, %v970
        %v1045 = vsub.f32 %v815, %v972
        %v1046 = vsub.f32 %v820, %v974
        %v1047 = vsub.f32 %v825, %v976
        %v1048 = vsub.f32 %v830, %v978
        %v1049 = vsub.f32 %v835, %v980
        %v1050 = vsub.f32 %v840, %v982
        %v1051 = vsub.f32 %v845, %v984
        %v1052 = vsub.f32 %v850, %v986
        %v1053 = vsub.f32 %v855, %v988
        %v1054 = vsub.f32 %v860, %v990
        %v1055 = vmul.f32 %v991, 1.442695
        %v1056 = vpow.pop %v1055
        %v1057 = vmul.f32 %v992, 1.442695
        %v1058 = vpow.pop %v1057
        %v1059 = vmul.f32 %v993, 1.442695
        %v1060 = vpow.pop %v1059
        %v1061 = vmul.f32 %v994, 1.442695
        %v1062 = vpow.pop %v1061
        %v1063 = vmul.f32 %v995, 1.442695
        %v1064 = vpow.pop %v1063
        %v1065 = vmul.f32 %v996, 1.442695
        %v1066 = vpow.pop %v1065
        %v1067 = vmul.f32 %v997, 1.442695
        %v1068 = vpow.pop %v1067
        %v1069 = vmul.f32 %v998, 1.442695
        %v1070 = vpow.pop %v1069
        %v1071 = vmul.f32 %v999, 1.442695
        %v1072 = vpow.pop %v1071
        %v1073 = vmul.f32 %v1000, 1.442695
        %v1074 = vpow.pop %v1073
        %v1075 = vmul.f32 %v1001, 1.442695
        %v1076 = vpow.pop %v1075
        %v1077 = vmul.f32 %v1002, 1.442695
        %v1078 = vpow.pop %v1077
        %v1079 = vmul.f32 %v1003, 1.442695
        %v1080 = vpow.pop %v1079
        %v1081 = vmul.f32 %v1004, 1.442695
        %v1082 = vpow.pop %v1081
        %v1083 = vmul.f32 %v1005, 1.442695
        %v1084 = vpow.pop %v1083
        %v1085 = vmul.f32 %v1006, 1.442695
        %v1086 = vpow.pop %v1085
        %v1087 = vmul.f32 %v1007, 1.442695
        %v1088 = vpow.pop %v1087
        %v1089 = vmul.f32 %v1008, 1.442695
        %v1090 = vpow.pop %v1089
        %v1091 = vmul.f32 %v1009, 1.442695
        %v1092 = vpow.pop %v1091
        %v1093 = vmul.f32 %v1010, 1.442695
        %v1094 = vpow.pop %v1093
        %v1095 = vmul.f32 %v1011, 1.442695
        %v1096 = vpow.pop %v1095
        %v1097 = vmul.f32 %v1012, 1.442695
        %v1098 = vpow.pop %v1097
        %v1099 = vmul.f32 %v1013, 1.442695
        %v1100 = vpow.pop %v1099
        %v1101 = vmul.f32 %v1014, 1.442695
        %v1102 = vpow.pop %v1101
        %v1103 = vmul.f32 %v1015, 1.442695
        %v1104 = vpow.pop %v1103
        %v1105 = vmul.f32 %v1016, 1.442695
        %v1106 = vpow.pop %v1105
        %v1107 = vmul.f32 %v1017, 1.442695
        %v1108 = vpow.pop %v1107
        %v1109 = vmul.f32 %v1018, 1.442695
        %v1110 = vpow.pop %v1109
        %v1111 = vmul.f32 %v1019, 1.442695
        %v1112 = vpow.pop %v1111
        %v1113 = vmul.f32 %v1020, 1.442695
        %v1114 = vpow.pop %v1113
        %v1115 = vmul.f32 %v1021, 1.442695
        %v1116 = vpow.pop %v1115
        %v1117 = vmul.f32 %v1022, 1.442695
        %v1118 = vpow.pop %v1117
        %v1119 = vmul.f32 %v1023, 1.442695
        %v1120 = vpow.pop %v1119
        %v1121 = vmul.f32 %v1024, 1.442695
        %v1122 = vpow.pop %v1121
        %v1123 = vmul.f32 %v1025, 1.442695
        %v1124 = vpow.pop %v1123
        %v1125 = vmul.f32 %v1026, 1.442695
        %v1126 = vpow.pop %v1125
        %v1127 = vmul.f32 %v1027, 1.442695
        %v1128 = vpow.pop %v1127
        %v1129 = vmul.f32 %v1028, 1.442695
        %v1130 = vpow.pop %v1129
        %v1131 = vmul.f32 %v1029, 1.442695
        %v1132 = vpow.pop %v1131
        %v1133 = vmul.f32 %v1030, 1.442695
        %v1134 = vpow.pop %v1133
        %v1135 = vmul.f32 %v1031, 1.442695
        %v1136 = vpow.pop %v1135
        %v1137 = vmul.f32 %v1032, 1.442695
        %v1138 = vpow.pop %v1137
        %v1139 = vmul.f32 %v1033, 1.442695
        %v1140 = vpow.pop %v1139
        %v1141 = vmul.f32 %v1034, 1.442695
        %v1142 = vpow.pop %v1141
        %v1143 = vmul.f32 %v1035, 1.442695
        %v1144 = vpow.pop %v1143
        %v1145 = vmul.f32 %v1036, 1.442695
        %v1146 = vpow.pop %v1145
        %v1147 = vmul.f32 %v1037, 1.442695
        %v1148 = vpow.pop %v1147
        %v1149 = vmul.f32 %v1038, 1.442695
        %v1150 = vpow.pop %v1149
        %v1151 = vmul.f32 %v1039, 1.442695
        %v1152 = vpow.pop %v1151
        %v1153 = vmul.f32 %v1040, 1.442695
        %v1154 = vpow.pop %v1153
        %v1155 = vmul.f32 %v1041, 1.442695
        %v1156 = vpow.pop %v1155
        %v1157 = vmul.f32 %v1042, 1.442695
        %v1158 = vpow.pop %v1157
        %v1159 = vmul.f32 %v1043, 1.442695
        %v1160 = vpow.pop %v1159
        %v1161 = vmul.f32 %v1044, 1.442695
        %v1162 = vpow.pop %v1161
        %v1163 = vmul.f32 %v1045, 1.442695
        %v1164 = vpow.pop %v1163
        %v1165 = vmul.f32 %v1046, 1.442695
        %v1166 = vpow.pop %v1165
        %v1167 = vmul.f32 %v1047, 1.442695
        %v1168 = vpow.pop %v1167
        %v1169 = vmul.f32 %v1048, 1.442695
        %v1170 = vpow.pop %v1169
        %v1171 = vmul.f32 %v1049, 1.442695
        %v1172 = vpow.pop %v1171
        %v1173 = vmul.f32 %v1050, 1.442695
        %v1174 = vpow.pop %v1173
        %v1175 = vmul.f32 %v1051, 1.442695
        %v1176 = vpow.pop %v1175
        %v1177 = vmul.f32 %v1052, 1.442695
        %v1178 = vpow.pop %v1177
        %v1179 = vmul.f32 %v1053, 1.442695
        %v1180 = vpow.pop %v1179
        %v1181 = vmul.f32 %v1054, 1.442695
        %v1182 = vpow.pop %v1181
        %1183 = vadd.xlane.f32.xlu0 %v1056
        %v1184 = vpop.xlane.xlu0 %1183
        %1185 = vadd.xlane.f32.xlu0 %v1058
        %v1186 = vpop.xlane.xlu0 %1185
        %1187 = vadd.xlane.f32.xlu0 %v1060
        %v1188 = vpop.xlane.xlu0 %1187
        %1189 = vadd.xlane.f32.xlu0 %v1062
        %v1190 = vpop.xlane.xlu0 %1189
        %1191 = vadd.xlane.f32.xlu0 %v1064
        %v1192 = vpop.xlane.xlu0 %1191
        %1193 = vadd.xlane.f32.xlu0 %v1066
        %v1194 = vpop.xlane.xlu0 %1193
        %1195 = vadd.xlane.f32.xlu0 %v1068
        %v1196 = vpop.xlane.xlu0 %1195
        %1197 = vadd.xlane.f32.xlu0 %v1070
        %v1198 = vpop.xlane.xlu0 %1197
        %1199 = vadd.xlane.f32.xlu0 %v1072
        %v1200 = vpop.xlane.xlu0 %1199
        %1201 = vadd.xlane.f32.xlu0 %v1074
        %v1202 = vpop.xlane.xlu0 %1201
        %1203 = vadd.xlane.f32.xlu0 %v1076
        %v1204 = vpop.xlane.xlu0 %1203
        %1205 = vadd.xlane.f32.xlu0 %v1078
        %v1206 = vpop.xlane.xlu0 %1205
        %1207 = vadd.xlane.f32.xlu0 %v1080
        %v1208 = vpop.xlane.xlu0 %1207
        %1209 = vadd.xlane.f32.xlu0 %v1082
        %v1210 = vpop.xlane.xlu0 %1209
        %1211 = vadd.xlane.f32.xlu0 %v1084
        %v1212 = vpop.xlane.xlu0 %1211
        %1213 = vadd.xlane.f32.xlu0 %v1086
        %v1214 = vpop.xlane.xlu0 %1213
        %1215 = vadd.xlane.f32.xlu0 %v1088
        %v1216 = vpop.xlane.xlu0 %1215
        %1217 = vadd.xlane.f32.xlu0 %v1090
        %v1218 = vpop.xlane.xlu0 %1217
        %1219 = vadd.xlane.f32.xlu0 %v1092
        %v1220 = vpop.xlane.xlu0 %1219
        %1221 = vadd.xlane.f32.xlu0 %v1094
        %v1222 = vpop.xlane.xlu0 %1221
        %1223 = vadd.xlane.f32.xlu0 %v1096
        %v1224 = vpop.xlane.xlu0 %1223
        %1225 = vadd.xlane.f32.xlu0 %v1098
        %v1226 = vpop.xlane.xlu0 %1225
        %1227 = vadd.xlane.f32.xlu0 %v1100
        %v1228 = vpop.xlane.xlu0 %1227
        %1229 = vadd.xlane.f32.xlu0 %v1102
        %v1230 = vpop.xlane.xlu0 %1229
        %1231 = vadd.xlane.f32.xlu0 %v1104
        %v1232 = vpop.xlane.xlu0 %1231
        %1233 = vadd.xlane.f32.xlu0 %v1106
        %v1234 = vpop.xlane.xlu0 %1233
        %1235 = vadd.xlane.f32.xlu0 %v1108
        %v1236 = vpop.xlane.xlu0 %1235
        %1237 = vadd.xlane.f32.xlu0 %v1110
        %v1238 = vpop.xlane.xlu0 %1237
        %1239 = vadd.xlane.f32.xlu0 %v1112
        %v1240 = vpop.xlane.xlu0 %1239
        %1241 = vadd.xlane.f32.xlu0 %v1114
        %v1242 = vpop.xlane.xlu0 %1241
        %1243 = vadd.xlane.f32.xlu0 %v1116
        %v1244 = vpop.xlane.xlu0 %1243
        %1245 = vadd.xlane.f32.xlu0 %v1118
        %v1246 = vpop.xlane.xlu0 %1245
        %1247 = vadd.xlane.f32.xlu0 %v1120
        %v1248 = vpop.xlane.xlu0 %1247
        %1249 = vadd.xlane.f32.xlu0 %v1122
        %v1250 = vpop.xlane.xlu0 %1249
        %1251 = vadd.xlane.f32.xlu0 %v1124
        %v1252 = vpop.xlane.xlu0 %1251
        %1253 = vadd.xlane.f32.xlu0 %v1126
        %v1254 = vpop.xlane.xlu0 %1253
        %1255 = vadd.xlane.f32.xlu0 %v1128
        %v1256 = vpop.xlane.xlu0 %1255
        %1257 = vadd.xlane.f32.xlu0 %v1130
        %v1258 = vpop.xlane.xlu0 %1257
        %1259 = vadd.xlane.f32.xlu0 %v1132
        %v1260 = vpop.xlane.xlu0 %1259
        %1261 = vadd.xlane.f32.xlu0 %v1134
        %v1262 = vpop.xlane.xlu0 %1261
        %1263 = vadd.xlane.f32.xlu0 %v1136
        %v1264 = vpop.xlane.xlu0 %1263
        %1265 = vadd.xlane.f32.xlu0 %v1138
        %v1266 = vpop.xlane.xlu0 %1265
        %1267 = vadd.xlane.f32.xlu0 %v1140
        %v1268 = vpop.xlane.xlu0 %1267
        %1269 = vadd.xlane.f32.xlu0 %v1142
        %v1270 = vpop.xlane.xlu0 %1269
        %1271 = vadd.xlane.f32.xlu0 %v1144
        %v1272 = vpop.xlane.xlu0 %1271
        %1273 = vadd.xlane.f32.xlu0 %v1146
        %v1274 = vpop.xlane.xlu0 %1273
        %1275 = vadd.xlane.f32.xlu0 %v1148
        %v1276 = vpop.xlane.xlu0 %1275
        %1277 = vadd.xlane.f32.xlu0 %v1150
        %v1278 = vpop.xlane.xlu0 %1277
        %1279 = vadd.xlane.f32.xlu0 %v1152
        %v1280 = vpop.xlane.xlu0 %1279
        %1281 = vadd.xlane.f32.xlu0 %v1154
        %v1282 = vpop.xlane.xlu0 %1281
        %1283 = vadd.xlane.f32.xlu0 %v1156
        %v1284 = vpop.xlane.xlu0 %1283
        %1285 = vadd.xlane.f32.xlu0 %v1158
        %v1286 = vpop.xlane.xlu0 %1285
        %1287 = vadd.xlane.f32.xlu0 %v1160
        %v1288 = vpop.xlane.xlu0 %1287
        %1289 = vadd.xlane.f32.xlu0 %v1162
        %v1290 = vpop.xlane.xlu0 %1289
        %1291 = vadd.xlane.f32.xlu0 %v1164
        %v1292 = vpop.xlane.xlu0 %1291
        %1293 = vadd.xlane.f32.xlu0 %v1166
        %v1294 = vpop.xlane.xlu0 %1293
        %1295 = vadd.xlane.f32.xlu0 %v1168
        %v1296 = vpop.xlane.xlu0 %1295
        %1297 = vadd.xlane.f32.xlu0 %v1170
        %v1298 = vpop.xlane.xlu0 %1297
        %1299 = vadd.xlane.f32.xlu0 %v1172
        %v1300 = vpop.xlane.xlu0 %1299
        %1301 = vadd.xlane.f32.xlu0 %v1174
        %v1302 = vpop.xlane.xlu0 %1301
        %1303 = vadd.xlane.f32.xlu0 %v1176
        %v1304 = vpop.xlane.xlu0 %1303
        %1305 = vadd.xlane.f32.xlu0 %v1178
        %v1306 = vpop.xlane.xlu0 %1305
        %1307 = vadd.xlane.f32.xlu0 %v1180
        %v1308 = vpop.xlane.xlu0 %1307
        %1309 = vadd.xlane.f32.xlu0 %v1182
        %v1310 = vpop.xlane.xlu0 %1309
        %v1311 = vrcp.pop %v1184
        %v1312 = vrcp.pop %v1186
        %v1313 = vrcp.pop %v1188
        %v1314 = vrcp.pop %v1190
        %v1315 = vrcp.pop %v1192
        %v1316 = vrcp.pop %v1194
        %v1317 = vrcp.pop %v1196
        %v1318 = vrcp.pop %v1198
        %v1319 = vrcp.pop %v1200
        %v1320 = vrcp.pop %v1202
        %v1321 = vrcp.pop %v1204
        %v1322 = vrcp.pop %v1206
        %v1323 = vrcp.pop %v1208
        %v1324 = vrcp.pop %v1210
        %v1325 = vrcp.pop %v1212
        %v1326 = vrcp.pop %v1214
        %v1327 = vrcp.pop %v1216
        %v1328 = vrcp.pop %v1218
        %v1329 = vrcp.pop %v1220
        %v1330 = vrcp.pop %v1222
        %v1331 = vrcp.pop %v1224
        %v1332 = vrcp.pop %v1226
        %v1333 = vrcp.pop %v1228
        %v1334 = vrcp.pop %v1230
        %v1335 = vrcp.pop %v1232
        %v1336 = vrcp.pop %v1234
        %v1337 = vrcp.pop %v1236
        %v1338 = vrcp.pop %v1238
        %v1339 = vrcp.pop %v1240
        %v1340 = vrcp.pop %v1242
        %v1341 = vrcp.pop %v1244
        %v1342 = vrcp.pop %v1246
        %v1343 = vrcp.pop %v1248
        %v1344 = vrcp.pop %v1250
        %v1345 = vrcp.pop %v1252
        %v1346 = vrcp.pop %v1254
        %v1347 = vrcp.pop %v1256
        %v1348 = vrcp.pop %v1258
        %v1349 = vrcp.pop %v1260
        %v1350 = vrcp.pop %v1262
        %v1351 = vrcp.pop %v1264
        %v1352 = vrcp.pop %v1266
        %v1353 = vrcp.pop %v1268
        %v1354 = vrcp.pop %v1270
        %v1355 = vrcp.pop %v1272
        %v1356 = vrcp.pop %v1274
        %v1357 = vrcp.pop %v1276
        %v1358 = vrcp.pop %v1278
        %v1359 = vrcp.pop %v1280
        %v1360 = vrcp.pop %v1282
        %v1361 = vrcp.pop %v1284
        %v1362 = vrcp.pop %v1286
        %v1363 = vrcp.pop %v1288
        %v1364 = vrcp.pop %v1290
        %v1365 = vrcp.pop %v1292
        %v1366 = vrcp.pop %v1294
        %v1367 = vrcp.pop %v1296
        %v1368 = vrcp.pop %v1298
        %v1369 = vrcp.pop %v1300
        %v1370 = vrcp.pop %v1302
        %v1371 = vrcp.pop %v1304
        %v1372 = vrcp.pop %v1306
        %v1373 = vrcp.pop %v1308
        %v1374 = vrcp.pop %v1310
        %v1375 = vmul.f32 %v1184, %v1311
        %v1376 = vmul.f32 %v1186, %v1312
        %v1377 = vmul.f32 %v1188, %v1313
        %v1378 = vmul.f32 %v1190, %v1314
        %v1379 = vmul.f32 %v1192, %v1315
        %v1380 = vmul.f32 %v1194, %v1316
        %v1381 = vmul.f32 %v1196, %v1317
        %v1382 = vmul.f32 %v1198, %v1318
        %v1383 = vmul.f32 %v1200, %v1319
        %v1384 = vmul.f32 %v1202, %v1320
        %v1385 = vmul.f32 %v1204, %v1321
        %v1386 = vmul.f32 %v1206, %v1322
        %v1387 = vmul.f32 %v1208, %v1323
        %v1388 = vmul.f32 %v1210, %v1324
        %v1389 = vmul.f32 %v1212, %v1325
        %v1390 = vmul.f32 %v1214, %v1326
        %v1391 = vmul.f32 %v1216, %v1327
        %v1392 = vmul.f32 %v1218, %v1328
        %v1393 = vmul.f32 %v1220, %v1329
        %v1394 = vmul.f32 %v1222, %v1330
        %v1395 = vmul.f32 %v1224, %v1331
        %v1396 = vmul.f32 %v1226, %v1332
        %v1397 = vmul.f32 %v1228, %v1333
        %v1398 = vmul.f32 %v1230, %v1334
        %v1399 = vmul.f32 %v1232, %v1335
        %v1400 = vmul.f32 %v1234, %v1336
        %v1401 = vmul.f32 %v1236, %v1337
        %v1402 = vmul.f32 %v1238, %v1338
        %v1403 = vmul.f32 %v1240, %v1339
        %v1404 = vmul.f32 %v1242, %v1340
        %v1405 = vmul.f32 %v1244, %v1341
        %v1406 = vmul.f32 %v1246, %v1342
        %v1407 = vmul.f32 %v1248, %v1343
        %v1408 = vmul.f32 %v1250, %v1344
        %v1409 = vmul.f32 %v1252, %v1345
        %v1410 = vmul.f32 %v1254, %v1346
        %v1411 = vmul.f32 %v1256, %v1347
        %v1412 = vmul.f32 %v1258, %v1348
        %v1413 = vmul.f32 %v1260, %v1349
        %v1414 = vmul.f32 %v1262, %v1350
        %v1415 = vmul.f32 %v1264, %v1351
        %v1416 = vmul.f32 %v1266, %v1352
        %v1417 = vmul.f32 %v1268, %v1353
        %v1418 = vmul.f32 %v1270, %v1354
        %v1419 = vmul.f32 %v1272, %v1355
        %v1420 = vmul.f32 %v1274, %v1356
        %v1421 = vmul.f32 %v1276, %v1357
        %v1422 = vmul.f32 %v1278, %v1358
        %v1423 = vmul.f32 %v1280, %v1359
        %v1424 = vmul.f32 %v1282, %v1360
        %v1425 = vmul.f32 %v1284, %v1361
        %v1426 = vmul.f32 %v1286, %v1362
        %v1427 = vmul.f32 %v1288, %v1363
        %v1428 = vmul.f32 %v1290, %v1364
        %v1429 = vmul.f32 %v1292, %v1365
        %v1430 = vmul.f32 %v1294, %v1366
        %v1431 = vmul.f32 %v1296, %v1367
        %v1432 = vmul.f32 %v1298, %v1368
        %v1433 = vmul.f32 %v1300, %v1369
        %v1434 = vmul.f32 %v1302, %v1370
        %v1435 = vmul.f32 %v1304, %v1371
        %v1436 = vmul.f32 %v1306, %v1372
        %v1437 = vmul.f32 %v1308, %v1373
        %v1438 = vmul.f32 %v1310, %v1374
        %v1439 = vsub.f32 2.0, %v1375
        %v1440 = vsub.f32 2.0, %v1376
        %v1441 = vsub.f32 2.0, %v1377
        %v1442 = vsub.f32 2.0, %v1378
        %v1443 = vsub.f32 2.0, %v1379
        %v1444 = vsub.f32 2.0, %v1380
        %v1445 = vsub.f32 2.0, %v1381
        %v1446 = vsub.f32 2.0, %v1382
        %v1447 = vsub.f32 2.0, %v1383
        %v1448 = vsub.f32 2.0, %v1384
        %v1449 = vsub.f32 2.0, %v1385
        %v1450 = vsub.f32 2.0, %v1386
        %v1451 = vsub.f32 2.0, %v1387
        %v1452 = vsub.f32 2.0, %v1388
        %v1453 = vsub.f32 2.0, %v1389
        %v1454 = vsub.f32 2.0, %v1390
        %v1455 = vsub.f32 2.0, %v1391
        %v1456 = vsub.f32 2.0, %v1392
        %v1457 = vsub.f32 2.0, %v1393
        %v1458 = vsub.f32 2.0, %v1394
        %v1459 = vsub.f32 2.0, %v1395
        %v1460 = vsub.f32 2.0, %v1396
        %v1461 = vsub.f32 2.0, %v1397
        %v1462 = vsub.f32 2.0, %v1398
        %v1463 = vsub.f32 2.0, %v1399
        %v1464 = vsub.f32 2.0, %v1400
        %v1465 = vsub.f32 2.0, %v1401
        %v1466 = vsub.f32 2.0, %v1402
        %v1467 = vsub.f32 2.0, %v1403
        %v1468 = vsub.f32 2.0, %v1404
        %v1469 = vsub.f32 2.0, %v1405
        %v1470 = vsub.f32 2.0, %v1406
        %v1471 = vsub.f32 2.0, %v1407
        %v1472 = vsub.f32 2.0, %v1408
        %v1473 = vsub.f32 2.0, %v1409
        %v1474 = vsub.f32 2.0, %v1410
        %v1475 = vsub.f32 2.0, %v1411
        %v1476 = vsub.f32 2.0, %v1412
        %v1477 = vsub.f32 2.0, %v1413
        %v1478 = vsub.f32 2.0, %v1414
        %v1479 = vsub.f32 2.0, %v1415
        %v1480 = vsub.f32 2.0, %v1416
        %v1481 = vsub.f32 2.0, %v1417
        %v1482 = vsub.f32 2.0, %v1418
        %v1483 = vsub.f32 2.0, %v1419
        %v1484 = vsub.f32 2.0, %v1420
        %v1485 = vsub.f32 2.0, %v1421
        %v1486 = vsub.f32 2.0, %v1422
        %v1487 = vsub.f32 2.0, %v1423
        %v1488 = vsub.f32 2.0, %v1424
        %v1489 = vsub.f32 2.0, %v1425
        %v1490 = vsub.f32 2.0, %v1426
        %v1491 = vsub.f32 2.0, %v1427
        %v1492 = vsub.f32 2.0, %v1428
        %v1493 = vsub.f32 2.0, %v1429
        %v1494 = vsub.f32 2.0, %v1430
        %v1495 = vsub.f32 2.0, %v1431
        %v1496 = vsub.f32 2.0, %v1432
        %v1497 = vsub.f32 2.0, %v1433
        %v1498 = vsub.f32 2.0, %v1434
        %v1499 = vsub.f32 2.0, %v1435
        %v1500 = vsub.f32 2.0, %v1436
        %v1501 = vsub.f32 2.0, %v1437
        %v1502 = vsub.f32 2.0, %v1438
        %v1503 = vmul.f32 %v1311, %v1439
        %v1504 = vmul.f32 %v1312, %v1440
        %v1505 = vmul.f32 %v1313, %v1441
        %v1506 = vmul.f32 %v1314, %v1442
        %v1507 = vmul.f32 %v1315, %v1443
        %v1508 = vmul.f32 %v1316, %v1444
        %v1509 = vmul.f32 %v1317, %v1445
        %v1510 = vmul.f32 %v1318, %v1446
        %v1511 = vmul.f32 %v1319, %v1447
        %v1512 = vmul.f32 %v1320, %v1448
        %v1513 = vmul.f32 %v1321, %v1449
        %v1514 = vmul.f32 %v1322, %v1450
        %v1515 = vmul.f32 %v1323, %v1451
        %v1516 = vmul.f32 %v1324, %v1452
        %v1517 = vmul.f32 %v1325, %v1453
        %v1518 = vmul.f32 %v1326, %v1454
        %v1519 = vmul.f32 %v1327, %v1455
        %v1520 = vmul.f32 %v1328, %v1456
        %v1521 = vmul.f32 %v1329, %v1457
        %v1522 = vmul.f32 %v1330, %v1458
        %v1523 = vmul.f32 %v1331, %v1459
        %v1524 = vmul.f32 %v1332, %v1460
        %v1525 = vmul.f32 %v1333, %v1461
        %v1526 = vmul.f32 %v1334, %v1462
        %v1527 = vmul.f32 %v1335, %v1463
        %v1528 = vmul.f32 %v1336, %v1464
        %v1529 = vmul.f32 %v1337, %v1465
        %v1530 = vmul.f32 %v1338, %v1466
        %v1531 = vmul.f32 %v1339, %v1467
        %v1532 = vmul.f32 %v1340, %v1468
        %v1533 = vmul.f32 %v1341, %v1469
        %v1534 = vmul.f32 %v1342, %v1470
        %v1535 = vmul.f32 %v1343, %v1471
        %v1536 = vmul.f32 %v1344, %v1472
        %v1537 = vmul.f32 %v1345, %v1473
        %v1538 = vmul.f32 %v1346, %v1474
        %v1539 = vmul.f32 %v1347, %v1475
        %v1540 = vmul.f32 %v1348, %v1476
        %v1541 = vmul.f32 %v1349, %v1477
        %v1542 = vmul.f32 %v1350, %v1478
        %v1543 = vmul.f32 %v1351, %v1479
        %v1544 = vmul.f32 %v1352, %v1480
        %v1545 = vmul.f32 %v1353, %v1481
        %v1546 = vmul.f32 %v1354, %v1482
        %v1547 = vmul.f32 %v1355, %v1483
        %v1548 = vmul.f32 %v1356, %v1484
        %v1549 = vmul.f32 %v1357, %v1485
        %v1550 = vmul.f32 %v1358, %v1486
        %v1551 = vmul.f32 %v1359, %v1487
        %v1552 = vmul.f32 %v1360, %v1488
        %v1553 = vmul.f32 %v1361, %v1489
        %v1554 = vmul.f32 %v1362, %v1490
        %v1555 = vmul.f32 %v1363, %v1491
        %v1556 = vmul.f32 %v1364, %v1492
        %v1557 = vmul.f32 %v1365, %v1493
        %v1558 = vmul.f32 %v1366, %v1494
        %v1559 = vmul.f32 %v1367, %v1495
        %v1560 = vmul.f32 %v1368, %v1496
        %v1561 = vmul.f32 %v1369, %v1497
        %v1562 = vmul.f32 %v1370, %v1498
        %v1563 = vmul.f32 %v1371, %v1499
        %v1564 = vmul.f32 %v1372, %v1500
        %v1565 = vmul.f32 %v1373, %v1501
        %v1566 = vmul.f32 %v1374, %v1502
        %v1567 = vmul.f32 %v1056, %v1503
        %v1568 = vmul.f32 %v1058, %v1504
        %v1569 = vmul.f32 %v1060, %v1505
        %v1570 = vmul.f32 %v1062, %v1506
        %v1571 = vmul.f32 %v1064, %v1507
        %v1572 = vmul.f32 %v1066, %v1508
        %v1573 = vmul.f32 %v1068, %v1509
        %v1574 = vmul.f32 %v1070, %v1510
        %v1575 = vmul.f32 %v1072, %v1511
        %v1576 = vmul.f32 %v1074, %v1512
        %v1577 = vmul.f32 %v1076, %v1513
        %v1578 = vmul.f32 %v1078, %v1514
        %v1579 = vmul.f32 %v1080, %v1515
        %v1580 = vmul.f32 %v1082, %v1516
        %v1581 = vmul.f32 %v1084, %v1517
        %v1582 = vmul.f32 %v1086, %v1518
        %v1583 = vmul.f32 %v1088, %v1519
        %v1584 = vmul.f32 %v1090, %v1520
        %v1585 = vmul.f32 %v1092, %v1521
        %v1586 = vmul.f32 %v1094, %v1522
        %v1587 = vmul.f32 %v1096, %v1523
        %v1588 = vmul.f32 %v1098, %v1524
        %v1589 = vmul.f32 %v1100, %v1525
        %v1590 = vmul.f32 %v1102, %v1526
        %v1591 = vmul.f32 %v1104, %v1527
        %v1592 = vmul.f32 %v1106, %v1528
        %v1593 = vmul.f32 %v1108, %v1529
        %v1594 = vmul.f32 %v1110, %v1530
        %v1595 = vmul.f32 %v1112, %v1531
        %v1596 = vmul.f32 %v1114, %v1532
        %v1597 = vmul.f32 %v1116, %v1533
        %v1598 = vmul.f32 %v1118, %v1534
        %v1599 = vmul.f32 %v1120, %v1535
        %v1600 = vmul.f32 %v1122, %v1536
        %v1601 = vmul.f32 %v1124, %v1537
        %v1602 = vmul.f32 %v1126, %v1538
        %v1603 = vmul.f32 %v1128, %v1539
        %v1604 = vmul.f32 %v1130, %v1540
        %v1605 = vmul.f32 %v1132, %v1541
        %v1606 = vmul.f32 %v1134, %v1542
        %v1607 = vmul.f32 %v1136, %v1543
        %v1608 = vmul.f32 %v1138, %v1544
        %v1609 = vmul.f32 %v1140, %v1545
        %v1610 = vmul.f32 %v1142, %v1546
        %v1611 = vmul.f32 %v1144, %v1547
        %v1612 = vmul.f32 %v1146, %v1548
        %v1613 = vmul.f32 %v1148, %v1549
        %v1614 = vmul.f32 %v1150, %v1550
        %v1615 = vmul.f32 %v1152, %v1551
        %v1616 = vmul.f32 %v1154, %v1552
        %v1617 = vmul.f32 %v1156, %v1553
        %v1618 = vmul.f32 %v1158, %v1554
        %v1619 = vmul.f32 %v1160, %v1555
        %v1620 = vmul.f32 %v1162, %v1556
        %v1621 = vmul.f32 %v1164, %v1557
        %v1622 = vmul.f32 %v1166, %v1558
        %v1623 = vmul.f32 %v1168, %v1559
        %v1624 = vmul.f32 %v1170, %v1560
        %v1625 = vmul.f32 %v1172, %v1561
        %v1626 = vmul.f32 %v1174, %v1562
        %v1627 = vmul.f32 %v1176, %v1563
        %v1628 = vmul.f32 %v1178, %v1564
        %v1629 = vmul.f32 %v1180, %v1565
        %v1630 = vmul.f32 %v1182, %v1566
        %v1631 = vmax.f32 %v1567, %v1568
        %v1632 = vmax.f32 %v1631, %v1569
        %v1633 = vmax.f32 %v1632, %v1570
        %v1634 = vmax.f32 %v1633, %v1571
        %v1635 = vmax.f32 %v1634, %v1572
        %v1636 = vmax.f32 %v1635, %v1573
        %v1637 = vmax.f32 %v1636, %v1574
        %v1638 = vrot.slane %v1637, 4
        %v1639 = vmax.f32 %v1637, %v1638
        %v1640 = vrot.slane %v1639, 2
        %v1641 = vmax.f32 %v1639, %v1640
        %v1642 = vrot.slane %v1641, 1
        %v1643 = vmax.f32 %v1641, %v1642
        %v1644 = vmax.f32 %v1575, %v1576
        %v1645 = vmax.f32 %v1644, %v1577
        %v1646 = vmax.f32 %v1645, %v1578
        %v1647 = vmax.f32 %v1646, %v1579
        %v1648 = vmax.f32 %v1647, %v1580
        %v1649 = vmax.f32 %v1648, %v1581
        %v1650 = vmax.f32 %v1649, %v1582
        %v1651 = vrot.slane %v1650, 4
        %v1652 = vmax.f32 %v1650, %v1651
        %v1653 = vrot.slane %v1652, 2
        %v1654 = vmax.f32 %v1652, %v1653
        %v1655 = vrot.slane %v1654, 1
        %v1656 = vmax.f32 %v1654, %v1655
        %v1657 = vmax.f32 %v1583, %v1584
        %v1658 = vmax.f32 %v1657, %v1585
        %v1659 = vmax.f32 %v1658, %v1586
        %v1660 = vmax.f32 %v1659, %v1587
        %v1661 = vmax.f32 %v1660, %v1588
        %v1662 = vmax.f32 %v1661, %v1589
        %v1663 = vmax.f32 %v1662, %v1590
        %v1664 = vrot.slane %v1663, 4
        %v1665 = vmax.f32 %v1663, %v1664
        %v1666 = vrot.slane %v1665, 2
        %v1667 = vmax.f32 %v1665, %v1666
        %v1668 = vrot.slane %v1667, 1
        %v1669 = vmax.f32 %v1667, %v1668
        %v1670 = vmax.f32 %v1591, %v1592
        %v1671 = vmax.f32 %v1670, %v1593
        %v1672 = vmax.f32 %v1671, %v1594
        %v1673 = vmax.f32 %v1672, %v1595
        %v1674 = vmax.f32 %v1673, %v1596
        %v1675 = vmax.f32 %v1674, %v1597
        %v1676 = vmax.f32 %v1675, %v1598
        %v1677 = vrot.slane %v1676, 4
        %v1678 = vmax.f32 %v1676, %v1677
        %v1679 = vrot.slane %v1678, 2
        %v1680 = vmax.f32 %v1678, %v1679
        %v1681 = vrot.slane %v1680, 1
        %v1682 = vmax.f32 %v1680, %v1681
        %v1683 = vmax.f32 %v1599, %v1600
        %v1684 = vmax.f32 %v1683, %v1601
        %v1685 = vmax.f32 %v1684, %v1602
        %v1686 = vmax.f32 %v1685, %v1603
        %v1687 = vmax.f32 %v1686, %v1604
        %v1688 = vmax.f32 %v1687, %v1605
        %v1689 = vmax.f32 %v1688, %v1606
        %v1690 = vrot.slane %v1689, 4
        %v1691 = vmax.f32 %v1689, %v1690
        %v1692 = vrot.slane %v1691, 2
        %v1693 = vmax.f32 %v1691, %v1692
        %v1694 = vrot.slane %v1693, 1
        %v1695 = vmax.f32 %v1693, %v1694
        %v1696 = vmax.f32 %v1607, %v1608
        %v1697 = vmax.f32 %v1696, %v1609
        %v1698 = vmax.f32 %v1697, %v1610
        %v1699 = vmax.f32 %v1698, %v1611
        %v1700 = vmax.f32 %v1699, %v1612
        %v1701 = vmax.f32 %v1700, %v1613
        %v1702 = vmax.f32 %v1701, %v1614
        %v1703 = vrot.slane %v1702, 4
        %v1704 = vmax.f32 %v1702, %v1703
        %v1705 = vrot.slane %v1704, 2
        %v1706 = vmax.f32 %v1704, %v1705
        %v1707 = vrot.slane %v1706, 1
        %v1708 = vmax.f32 %v1706, %v1707
        %v1709 = vmax.f32 %v1615, %v1616
        %v1710 = vmax.f32 %v1709, %v1617
        %v1711 = vmax.f32 %v1710, %v1618
        %v1712 = vmax.f32 %v1711, %v1619
        %v1713 = vmax.f32 %v1712, %v1620
        %v1714 = vmax.f32 %v1713, %v1621
        %v1715 = vmax.f32 %v1714, %v1622
        %v1716 = vrot.slane %v1715, 4
        %v1717 = vmax.f32 %v1715, %v1716
        %v1718 = vrot.slane %v1717, 2
        %v1719 = vmax.f32 %v1717, %v1718
        %v1720 = vrot.slane %v1719, 1
        %v1721 = vmax.f32 %v1719, %v1720
        %v1722 = vmax.f32 %v1623, %v1624
        %v1723 = vmax.f32 %v1722, %v1625
        %v1724 = vmax.f32 %v1723, %v1626
        %v1725 = vmax.f32 %v1724, %v1627
        %v1726 = vmax.f32 %v1725, %v1628
        %v1727 = vmax.f32 %v1726, %v1629
        %v1728 = vmax.f32 %v1727, %v1630
        %v1729 = vrot.slane %v1728, 4
        %v1730 = vmax.f32 %v1728, %v1729
        %v1731 = vrot.slane %v1730, 2
        %v1732 = vmax.f32 %v1730, %v1731
        %v1733 = vrot.slane %v1732, 1
        %v1734 = vmax.f32 %v1732, %v1733
        %vm1743 = vcmask 1041409
        %v1744 = vsel %vm1743, %v1656, %v1643
        %vm1745 = vcmask 1042434
        %v1746 = vsel %vm1745, %v1669, %v1744
        %vm1747 = vcmask 1043459
        %v1748 = vsel %vm1747, %v1682, %v1746
        %vm1749 = vcmask 1044484
        %v1750 = vsel %vm1749, %v1695, %v1748
        %vm1751 = vcmask 1045509
        %v1752 = vsel %vm1751, %v1708, %v1750
        %vm1753 = vcmask 1046534
        %v1754 = vsel %vm1753, %v1721, %v1752
        %vm1755 = vcmask 1047559
        %v1756 = vsel %vm1755, %v1734, %v1754
        %1758 = vadd.xlane.f32.xlu0 %v1756
        %v1759 = vpop.xlane.xlu0 %1758
        %v1760 = vmax.f32 %v1759, 1e-12
        %v1761 = vrcp.pop %v1760
        %v1762 = vmul.f32 %v1760, %v1761
        %v1763 = vsub.f32 2.0, %v1762
        %v1764 = vmul.f32 %v1761, %v1763
        %v1766 = vrot.slane %v1764, 1
        %v1767 = vrot.slane %v1764, 2
        %v1768 = vrot.slane %v1764, 3
        %v1769 = vrot.slane %v1764, 4
        %v1770 = vrot.slane %v1764, 5
        %v1771 = vrot.slane %v1764, 6
        %v1772 = vrot.slane %v1764, 7
        %v1781 = vmul.f32 %v1643, %v1764
        %v1782 = vmul.f32 %v1656, %v1766
        %v1783 = vmul.f32 %v1669, %v1767
        %v1784 = vmul.f32 %v1682, %v1768
        %v1785 = vmul.f32 %v1695, %v1769
        %v1786 = vmul.f32 %v1708, %v1770
        %v1787 = vmul.f32 %v1721, %v1771
        %v1788 = vmul.f32 %v1734, %v1772
        %v1797 = vrot.slane %v1782, 7
        %v1798 = vsel %vm1743, %v1797, %v1781
        %v1799 = vrot.slane %v1783, 6
        %v1800 = vsel %vm1745, %v1799, %v1798
        %v1801 = vrot.slane %v1784, 5
        %v1802 = vsel %vm1747, %v1801, %v1800
        %v1803 = vrot.slane %v1785, 4
        %v1804 = vsel %vm1749, %v1803, %v1802
        %v1805 = vrot.slane %v1786, 3
        %v1806 = vsel %vm1751, %v1805, %v1804
        %v1807 = vrot.slane %v1787, 2
        %v1808 = vsel %vm1753, %v1807, %v1806
        %v1809 = vrot.slane %v1788, 1
        %v1810 = vsel %vm1755, %v1809, %v1808
        %1812 = vst [vmem:[%s202] sm:$0xff] %v1810
        %v1813 = vpack.c.bf16 %v1568, %v1567
        %v1814 = vpack.c.bf16 %v1570, %v1569
        %v1815 = vpack.c.bf16 %v1572, %v1571
        %v1816 = vpack.c.bf16 %v1574, %v1573
        %v1817 = vpack.c.bf16 %v1576, %v1575
        %v1818 = vpack.c.bf16 %v1578, %v1577
        %v1819 = vpack.c.bf16 %v1580, %v1579
        %v1820 = vpack.c.bf16 %v1582, %v1581
        %v1821 = vpack.c.bf16 %v1584, %v1583
        %v1822 = vpack.c.bf16 %v1586, %v1585
        %v1823 = vpack.c.bf16 %v1588, %v1587
        %v1824 = vpack.c.bf16 %v1590, %v1589
        %v1825 = vpack.c.bf16 %v1592, %v1591
        %v1826 = vpack.c.bf16 %v1594, %v1593
        %v1827 = vpack.c.bf16 %v1596, %v1595
        %v1828 = vpack.c.bf16 %v1598, %v1597
        %v1829 = vpack.c.bf16 %v1600, %v1599
        %v1830 = vpack.c.bf16 %v1602, %v1601
        %v1831 = vpack.c.bf16 %v1604, %v1603
        %v1832 = vpack.c.bf16 %v1606, %v1605
        %v1833 = vpack.c.bf16 %v1608, %v1607
        %v1834 = vpack.c.bf16 %v1610, %v1609
        %v1835 = vpack.c.bf16 %v1612, %v1611
        %v1836 = vpack.c.bf16 %v1614, %v1613
        %v1837 = vpack.c.bf16 %v1616, %v1615
        %v1838 = vpack.c.bf16 %v1618, %v1617
        %v1839 = vpack.c.bf16 %v1620, %v1619
        %v1840 = vpack.c.bf16 %v1622, %v1621
        %v1841 = vpack.c.bf16 %v1624, %v1623
        %v1842 = vpack.c.bf16 %v1626, %v1625
        %v1843 = vpack.c.bf16 %v1628, %v1627
        %v1844 = vpack.c.bf16 %v1630, %v1629
        %v1877 = vunpack.c.l.b16 %v1813
        %v1878 = vunpack.c.h.b16 %v1813
        %v1879 = vunpack.c.l.b16 %v1814
        %v1880 = vunpack.c.h.b16 %v1814
        %v1881 = vunpack.c.l.b16 %v1815
        %v1882 = vunpack.c.h.b16 %v1815
        %v1883 = vunpack.c.l.b16 %v1816
        %v1884 = vunpack.c.h.b16 %v1816
        %v1885 = vunpack.c.l.b16 %v1817
        %v1886 = vunpack.c.h.b16 %v1817
        %v1887 = vunpack.c.l.b16 %v1818
        %v1888 = vunpack.c.h.b16 %v1818
        %v1889 = vunpack.c.l.b16 %v1819
        %v1890 = vunpack.c.h.b16 %v1819
        %v1891 = vunpack.c.l.b16 %v1820
        %v1892 = vunpack.c.h.b16 %v1820
        %v1893 = vunpack.c.l.b16 %v1821
        %v1894 = vunpack.c.h.b16 %v1821
        %v1895 = vunpack.c.l.b16 %v1822
        %v1896 = vunpack.c.h.b16 %v1822
        %v1897 = vunpack.c.l.b16 %v1823
        %v1898 = vunpack.c.h.b16 %v1823
        %v1899 = vunpack.c.l.b16 %v1824
        %v1900 = vunpack.c.h.b16 %v1824
        %v1901 = vunpack.c.l.b16 %v1825
        %v1902 = vunpack.c.h.b16 %v1825
        %v1903 = vunpack.c.l.b16 %v1826
        %v1904 = vunpack.c.h.b16 %v1826
        %v1905 = vunpack.c.l.b16 %v1827
        %v1906 = vunpack.c.h.b16 %v1827
        %v1907 = vunpack.c.l.b16 %v1828
        %v1908 = vunpack.c.h.b16 %v1828
        %v1909 = vunpack.c.l.b16 %v1829
        %v1910 = vunpack.c.h.b16 %v1829
        %v1911 = vunpack.c.l.b16 %v1830
        %v1912 = vunpack.c.h.b16 %v1830
        %v1913 = vunpack.c.l.b16 %v1831
        %v1914 = vunpack.c.h.b16 %v1831
        %v1915 = vunpack.c.l.b16 %v1832
        %v1916 = vunpack.c.h.b16 %v1832
        %v1917 = vunpack.c.l.b16 %v1833
        %v1918 = vunpack.c.h.b16 %v1833
        %v1919 = vunpack.c.l.b16 %v1834
        %v1920 = vunpack.c.h.b16 %v1834
        %v1921 = vunpack.c.l.b16 %v1835
        %v1922 = vunpack.c.h.b16 %v1835
        %v1923 = vunpack.c.l.b16 %v1836
        %v1924 = vunpack.c.h.b16 %v1836
        %v1925 = vunpack.c.l.b16 %v1837
        %v1926 = vunpack.c.h.b16 %v1837
        %v1927 = vunpack.c.l.b16 %v1838
        %v1928 = vunpack.c.h.b16 %v1838
        %v1929 = vunpack.c.l.b16 %v1839
        %v1930 = vunpack.c.h.b16 %v1839
        %v1931 = vunpack.c.l.b16 %v1840
        %v1932 = vunpack.c.h.b16 %v1840
        %v1933 = vunpack.c.l.b16 %v1841
        %v1934 = vunpack.c.h.b16 %v1841
        %v1935 = vunpack.c.l.b16 %v1842
        %v1936 = vunpack.c.h.b16 %v1842
        %v1937 = vunpack.c.l.b16 %v1843
        %v1938 = vunpack.c.h.b16 %v1843
        %v1939 = vunpack.c.l.b16 %v1844
        %v1940 = vunpack.c.h.b16 %v1844
        %v1941 = vpack.c.b16 %v1877, %v1877
        %v1942 = vpack.c.b16 %v1878, %v1878
        %v1943 = vpack.c.b16 %v1879, %v1879
        %v1944 = vpack.c.b16 %v1880, %v1880
        %v1945 = vpack.c.b16 %v1881, %v1881
        %v1946 = vpack.c.b16 %v1882, %v1882
        %v1947 = vpack.c.b16 %v1883, %v1883
        %v1948 = vpack.c.b16 %v1884, %v1884
        %v1949 = vpack.c.b16 %v1885, %v1885
        %v1950 = vpack.c.b16 %v1886, %v1886
        %v1951 = vpack.c.b16 %v1887, %v1887
        %v1952 = vpack.c.b16 %v1888, %v1888
        %v1953 = vpack.c.b16 %v1889, %v1889
        %v1954 = vpack.c.b16 %v1890, %v1890
        %v1955 = vpack.c.b16 %v1891, %v1891
        %v1956 = vpack.c.b16 %v1892, %v1892
        %v1957 = vpack.c.b16 %v1893, %v1893
        %v1958 = vpack.c.b16 %v1894, %v1894
        %v1959 = vpack.c.b16 %v1895, %v1895
        %v1960 = vpack.c.b16 %v1896, %v1896
        %v1961 = vpack.c.b16 %v1897, %v1897
        %v1962 = vpack.c.b16 %v1898, %v1898
        %v1963 = vpack.c.b16 %v1899, %v1899
        %v1964 = vpack.c.b16 %v1900, %v1900
        %v1965 = vpack.c.b16 %v1901, %v1901
        %v1966 = vpack.c.b16 %v1902, %v1902
        %v1967 = vpack.c.b16 %v1903, %v1903
        %v1968 = vpack.c.b16 %v1904, %v1904
        %v1969 = vpack.c.b16 %v1905, %v1905
        %v1970 = vpack.c.b16 %v1906, %v1906
        %v1971 = vpack.c.b16 %v1907, %v1907
        %v1972 = vpack.c.b16 %v1908, %v1908
        %v1973 = vpack.c.b16 %v1909, %v1909
        %v1974 = vpack.c.b16 %v1910, %v1910
        %v1975 = vpack.c.b16 %v1911, %v1911
        %v1976 = vpack.c.b16 %v1912, %v1912
        %v1977 = vpack.c.b16 %v1913, %v1913
        %v1978 = vpack.c.b16 %v1914, %v1914
        %v1979 = vpack.c.b16 %v1915, %v1915
        %v1980 = vpack.c.b16 %v1916, %v1916
        %v1981 = vpack.c.b16 %v1917, %v1917
        %v1982 = vpack.c.b16 %v1918, %v1918
        %v1983 = vpack.c.b16 %v1919, %v1919
        %v1984 = vpack.c.b16 %v1920, %v1920
        %v1985 = vpack.c.b16 %v1921, %v1921
        %v1986 = vpack.c.b16 %v1922, %v1922
        %v1987 = vpack.c.b16 %v1923, %v1923
        %v1988 = vpack.c.b16 %v1924, %v1924
        %v1989 = vpack.c.b16 %v1925, %v1925
        %v1990 = vpack.c.b16 %v1926, %v1926
        %v1991 = vpack.c.b16 %v1927, %v1927
        %v1992 = vpack.c.b16 %v1928, %v1928
        %v1993 = vpack.c.b16 %v1929, %v1929
        %v1994 = vpack.c.b16 %v1930, %v1930
        %v1995 = vpack.c.b16 %v1931, %v1931
        %v1996 = vpack.c.b16 %v1932, %v1932
        %v1997 = vpack.c.b16 %v1933, %v1933
        %v1998 = vpack.c.b16 %v1934, %v1934
        %v1999 = vpack.c.b16 %v1935, %v1935
        %v2000 = vpack.c.b16 %v1936, %v1936
        %v2001 = vpack.c.b16 %v1937, %v1937
        %v2002 = vpack.c.b16 %v1938, %v1938
        %v2003 = vpack.c.b16 %v1939, %v1939
        %v2004 = vpack.c.b16 %v1940, %v1940
        %2069 = vst [vmem:[%s195] sm:$0xf] %v1941
        %2070 = vst [vmem:[%s195 + $0x4] sm:$0xf] %v1942
        %2071 = vst [vmem:[%s195 + $0x8] sm:$0xf] %v1943
        %2072 = vst [vmem:[%s195 + $0xc] sm:$0xf] %v1944
        %2073 = vst [vmem:[%s195 + $0x10] sm:$0xf] %v1945
        %2074 = vst [vmem:[%s195 + $0x14] sm:$0xf] %v1946
        %2075 = vst [vmem:[%s195 + $0x18] sm:$0xf] %v1947
        %2076 = vst [vmem:[%s195 + $0x1c] sm:$0xf] %v1948
        %2077 = vst [vmem:[%s195 + $0x20] sm:$0xf] %v1949
        %2078 = vst [vmem:[%s195 + $0x24] sm:$0xf] %v1950
        %2079 = vst [vmem:[%s195 + $0x28] sm:$0xf] %v1951
        %2080 = vst [vmem:[%s195 + $0x2c] sm:$0xf] %v1952
        %2081 = vst [vmem:[%s195 + $0x30] sm:$0xf] %v1953
        %2082 = vst [vmem:[%s195 + $0x34] sm:$0xf] %v1954
        %2083 = vst [vmem:[%s195 + $0x38] sm:$0xf] %v1955
        %2084 = vst [vmem:[%s195 + $0x3c] sm:$0xf] %v1956
        %2085 = vst [vmem:[%s195 + $0x40] sm:$0xf] %v1957
        %2086 = vst [vmem:[%s195 + $0x44] sm:$0xf] %v1958
        %2087 = vst [vmem:[%s195 + $0x48] sm:$0xf] %v1959
        %2088 = vst [vmem:[%s195 + $0x4c] sm:$0xf] %v1960
        %2089 = vst [vmem:[%s195 + $0x50] sm:$0xf] %v1961
        %2090 = vst [vmem:[%s195 + $0x54] sm:$0xf] %v1962
        %2091 = vst [vmem:[%s195 + $0x58] sm:$0xf] %v1963
        %2092 = vst [vmem:[%s195 + $0x5c] sm:$0xf] %v1964
        %2093 = vst [vmem:[%s195 + $0x60] sm:$0xf] %v1965
        %2094 = vst [vmem:[%s195 + $0x64] sm:$0xf] %v1966
        %2095 = vst [vmem:[%s195 + $0x68] sm:$0xf] %v1967
        %2096 = vst [vmem:[%s195 + $0x6c] sm:$0xf] %v1968
        %2097 = vst [vmem:[%s195 + $0x70] sm:$0xf] %v1969
        %2098 = vst [vmem:[%s195 + $0x74] sm:$0xf] %v1970
        %2099 = vst [vmem:[%s195 + $0x78] sm:$0xf] %v1971
        %2100 = vst [vmem:[%s195 + $0x7c] sm:$0xf] %v1972
        %2101 = vst [vmem:[%s195 + $0x80] sm:$0xf] %v1973
        %2102 = vst [vmem:[%s195 + $0x84] sm:$0xf] %v1974
        %2103 = vst [vmem:[%s195 + $0x88] sm:$0xf] %v1975
        %2104 = vst [vmem:[%s195 + $0x8c] sm:$0xf] %v1976
        %2105 = vst [vmem:[%s195 + $0x90] sm:$0xf] %v1977
        %2106 = vst [vmem:[%s195 + $0x94] sm:$0xf] %v1978
        %2107 = vst [vmem:[%s195 + $0x98] sm:$0xf] %v1979
        %2108 = vst [vmem:[%s195 + $0x9c] sm:$0xf] %v1980
        %2109 = vst [vmem:[%s195 + $0xa0] sm:$0xf] %v1981
        %2110 = vst [vmem:[%s195 + $0xa4] sm:$0xf] %v1982
        %2111 = vst [vmem:[%s195 + $0xa8] sm:$0xf] %v1983
        %2112 = vst [vmem:[%s195 + $0xac] sm:$0xf] %v1984
        %2113 = vst [vmem:[%s195 + $0xb0] sm:$0xf] %v1985
        %2114 = vst [vmem:[%s195 + $0xb4] sm:$0xf] %v1986
        %2115 = vst [vmem:[%s195 + $0xb8] sm:$0xf] %v1987
        %2116 = vst [vmem:[%s195 + $0xbc] sm:$0xf] %v1988
        %2117 = vst [vmem:[%s195 + $0xc0] sm:$0xf] %v1989
        %2118 = vst [vmem:[%s195 + $0xc4] sm:$0xf] %v1990
        %2119 = vst [vmem:[%s195 + $0xc8] sm:$0xf] %v1991
        %2120 = vst [vmem:[%s195 + $0xcc] sm:$0xf] %v1992
        %2121 = vst [vmem:[%s195 + $0xd0] sm:$0xf] %v1993
        %2122 = vst [vmem:[%s195 + $0xd4] sm:$0xf] %v1994
        %2123 = vst [vmem:[%s195 + $0xd8] sm:$0xf] %v1995
        %2124 = vst [vmem:[%s195 + $0xdc] sm:$0xf] %v1996
        %2125 = vst [vmem:[%s195 + $0xe0] sm:$0xf] %v1997
        %2126 = vst [vmem:[%s195 + $0xe4] sm:$0xf] %v1998
        %2127 = vst [vmem:[%s195 + $0xe8] sm:$0xf] %v1999
        %2128 = vst [vmem:[%s195 + $0xec] sm:$0xf] %v2000
        %2129 = vst [vmem:[%s195 + $0xf0] sm:$0xf] %v2001
        %2130 = vst [vmem:[%s195 + $0xf4] sm:$0xf] %v2002
        %2131 = vst [vmem:[%s195 + $0xf8] sm:$0xf] %v2003
        %2132 = vst [vmem:[%s195 + $0xfc] sm:$0xf] %v2004
        %s2133 = sand.u32 %s98, 1
        %s2134 = scalar_lea.sflag [#allocation3], %s2133
        %s2135 = sand.u32 %s98, 1
        %s2136 = smul.addr %s2135, 256
        %s2137 = scalar_lea.vmem [#allocation2], %s2136
        %s2138 = sand.u32 %s124, 1
        %s2139 = scalar_lea.sflag [#allocation5], %s2138
        %s2140 = sand.u32 %s124, 1
        %s2141 = smul.addr %s2140, 8
        %s2142 = scalar_lea.vmem [#allocation4], %s2141
        // Predicated region
        $region33: #{tpu_custom_call.1} parent=31 // pred_check
          %p2143 = pneg %p108
        $region34: #{tpu_custom_call.1} parent=31 // pred_check_branch
          %2145 = sbr.rel (%p2143) target = $region36
        $region35: #{tpu_custom_call.1} parent=31 // pred_region
          %s2146 = smul.u32 64, %s22
          %s2148 = ssub.s32 4096, 4096
          %2149 = vsyncadd %s2134, %s2148
          %s2150 = smul.addr %s2146, 64
          %s2151 = scalar_lea.hbm %s3, %s2150
          %s2152 = sshll.u32 %s2137, 4
          %s2153 = int_to_ptr.vmem [resolvable:$true] %s2152
          %2158 = dma.vmem_to_hbm [thread:$0]  %s2153, 4096, %s2151, %s2134, 64, 64, 4
        $region36: #{tpu_custom_call.1} parent=31 // pred_fallthru
          _
        // Predicated region
        $region37: #{tpu_custom_call.1} parent=31 // pred_check
          %p2159 = pneg %p134
        $region38: #{tpu_custom_call.1} parent=31 // pred_check_branch
          %2161 = sbr.rel (%p2159) target = $region40
        $region39: #{tpu_custom_call.1} parent=31 // pred_region
          %s2163 = ssub.s32 128, 128
          %2164 = vsyncadd %s2139, %s2163
          %s2165 = smul.addr %s22, 128
          %s2166 = scalar_lea.hbm %s4, %s2165
          %s2168 = sshll.u32 %s2142, 4
          %s2169 = int_to_ptr.vmem [resolvable:$true] %s2168
          %2171 = dma.vmem_to_hbm [thread:$0]  %s2169, 128, %s2166, %s2139
        $region40: #{tpu_custom_call.1} parent=31 // pred_fallthru
          _
      $region32: #{tpu_custom_call.1} parent=5 // pred_fallthru
        _
      %p2172 = scmp.le.s32.totalorder 2, %s17
      // Predicated region
      $region41: #{tpu_custom_call.1} parent=5 // pred_check
        %p2173 = pneg %p2172
      $region42: #{tpu_custom_call.1} parent=5 // pred_check_branch
        %2175 = sbr.rel (%p2173) target = $region44
      $region43: #{tpu_custom_call.1} parent=5 // pred_region
        %s2176 = ssub.s32 %s17, 2
        // Predicated region
        $region45: #{tpu_custom_call.1} parent=43 // pred_check
          %p2177 = pneg %p114
        $region46: #{tpu_custom_call.1} parent=43 // pred_check_branch
          %2179 = sbr.rel (%p2177) target = $region48
        $region47: #{tpu_custom_call.1} parent=43 // pred_region
          %s2180 = sand.u32 %s99, 1
          %s2181 = scalar_lea.sflag [#allocation3], %s2180
          %s2182 = sand.u32 %s99, 1
          %s2183 = smul.addr %s2182, 256
          %s2184 = scalar_lea.vmem [#allocation2], %s2183
          %2185 = dma.done %s2181, 4096
        $region48: #{tpu_custom_call.1} parent=43 // pred_fallthru
          _
        // Predicated region
        $region49: #{tpu_custom_call.1} parent=43 // pred_check
          %p2186 = pneg %p140
        $region50: #{tpu_custom_call.1} parent=43 // pred_check_branch
          %2188 = sbr.rel (%p2186) target = $region52
        $region51: #{tpu_custom_call.1} parent=43 // pred_region
          %s2189 = sand.u32 %s125, 1
          %s2190 = scalar_lea.sflag [#allocation5], %s2189
          %s2191 = sand.u32 %s125, 1
          %s2192 = smul.addr %s2191, 8
          %s2193 = scalar_lea.vmem [#allocation4], %s2192
          %2194 = dma.done %s2190, 128
        $region52: #{tpu_custom_call.1} parent=43 // pred_fallthru
          _
      $region44: #{tpu_custom_call.1} parent=5 // pred_fallthru
        _
    $region6: #{tpu_custom_call.1} parent=1 // loop_footer
      %s21 = sadd.s32 1, %s17
    $region7: #{tpu_custom_call.1} parent=1 // loop_footer_branch
      %16 = sbr.rel target = $region3
    $region8: #{tpu_custom_call.1} parent=1 // loop_exit
      _
    %2195 = vsyncpa [#allocation3], 1
    %s2196 = scalar_lea.sflag [#allocation3], 1
    %2197 = vsyncpa %s2196, 1
    %2198 = vsyncpa [#allocation5], 1
    %s2199 = scalar_lea.sflag [#allocation5], 1
    %2200 = vsyncpa %s2199, 1

</llo_original>
